<compile_context>
chip_gen: v6e
topology: v6e:2x2x1
jax: 0.10.0
libtpu: 0.0.40
codegen_flags: <defaults>
</compile_context>

<pallas_src>
import functools
import math

import jax
import jax.numpy as jnp
from jax import lax
from jax.experimental import pallas as pl
from jax.experimental.pallas import tpu as pltpu


def _layernorm(x, gamma, beta, eps=1e-5):
    # x: (S, D) float32 ; gamma/beta: (D,) float32
    mu = jnp.mean(x, axis=-1, keepdims=True)
    var = jnp.mean((x - mu) ** 2, axis=-1, keepdims=True)
    return (x - mu) * lax.rsqrt(var + eps) * gamma + beta


def _attn_group(q_g, k_g, v_g, g, hd):
    """Attention for `g` adjacent heads.

    q_g/k_g/v_g: (S, g*hd) bf16, with the softmax scale already folded into q.
    Returns the (S, g*hd) bf16 concatenated head outputs (one lane-dense slab).
    """
    outs = []
    for j in range(g):
        qh = q_g[:, j * hd:(j + 1) * hd]
        kh = k_g[:, j * hd:(j + 1) * hd]
        vh = v_g[:, j * hd:(j + 1) * hd]
        # scores = q @ k.T, contracted over hd, f32 accumulation on the MXU.
        s = lax.dot_general(qh, kh, (((1,), (1,)), ((), ())),
                            preferred_element_type=jnp.float32)       # (S, S)
        m = jnp.max(s, axis=-1, keepdims=True)
        p = jnp.exp(s - m)
        p = p * pl.reciprocal(jnp.sum(p, axis=-1, keepdims=True), approx=True)
        outs.append(jnp.dot(p.astype(jnp.bfloat16), vh,
                            preferred_element_type=jnp.float32))      # (S, hd)
    out = outs[0] if g == 1 else jnp.concatenate(outs, axis=-1)       # (S, g*hd)
    return out.astype(jnp.bfloat16)


def _block_kernel(x_ref, ln1_g_ref, ln1_b_ref, wqkv_ref, bqkv_ref, wo_ref,
                  bo_ref, ln2_g_ref, ln2_b_ref, wfc_ref, bfc_ref, wproj_ref,
                  bproj_ref, o_ref, qkv_scratch, attn_scratch, *, d_model,
                  n_head, heads_per_group, mlp_rows):
    D = d_model
    H = n_head
    hd = D // H
    g = heads_per_group
    gw = g * hd
    n_groups = H // g
    S = x_ref.shape[1]
    scale = 1.0 / math.sqrt(hd)

    # ---- load current batch element ----
    x = x_ref[0].astype(jnp.float32)                                  # (S, D)

    # ---- ln_1 (always fp32, like the fp16-safe LayerNorm) ----
    xn = _layernorm(x, ln1_g_ref[0], ln1_b_ref[0])
    xn_bf = xn.astype(jnp.bfloat16)

    # ---- fused in-projection (bf16 MXU inputs, f32 accumulation) ----
    qkv = jnp.dot(xn_bf, wqkv_ref[...],
                  preferred_element_type=jnp.float32) + bqkv_ref[0]   # (S, 3D)
    # Fold the softmax scale into q once, stash qkv as bf16 for the head loop.
    qkv_scratch[:, :D] = (qkv[:, :D] * scale).astype(jnp.bfloat16)
    qkv_scratch[:, D:] = qkv[:, D:].astype(jnp.bfloat16)

    # ---- attention: `g` heads per iteration -> lane-dense scratch stores ----
    if gw % 128 == 0 and n_groups >= 2:
        # 128-aligned dynamic offsets: compact loop body, bounded live ranges.
        @pl.loop(0, n_groups)
        def _(i):
            qb = pl.multiple_of(i * gw, gw)
            kb = pl.multiple_of(D + i * gw, gw)          # D % gw == 0 here
            vb = pl.multiple_of(2 * D + i * gw, gw)
            out = _attn_group(qkv_scratch[:, pl.ds(qb, gw)],
                              qkv_scratch[:, pl.ds(kb, gw)],
                              qkv_scratch[:, pl.ds(vb, gw)], g, hd)
            attn_scratch[:, pl.ds(qb, gw)] = out
    else:
        # Static fallback (small / non-128-aligned head groups).
        for i in range(n_groups):
            b0 = i * gw
            out = _attn_group(qkv_scratch[:, b0:b0 + gw],
                              qkv_scratch[:, D + b0:D + b0 + gw],
                              qkv_scratch[:, 2 * D + b0:2 * D + b0 + gw],
                              g, hd)
            attn_scratch[:, b0:b0 + gw] = out

    # ---- out-projection (bf16 scratch feeds MXU directly) + residual 1 ----
    attn = jnp.dot(attn_scratch[...], wo_ref[...],
                   preferred_element_type=jnp.float32) + bo_ref[0]    # (S, D)
    x1 = x + attn

    # ---- ln_2 ----
    x2n_bf = _layernorm(x1, ln2_g_ref[0], ln2_b_ref[0]).astype(jnp.bfloat16)

    # ---- MLP: c_fc -> QuickGELU -> c_proj ----
    b_fc = bfc_ref[0]                                                 # (4D,)
    b_proj = bproj_ref[0]                                             # (D,)

    def mlp_of(xb_bf):
        h = jnp.dot(xb_bf, wfc_ref[...],
                    preferred_element_type=jnp.float32) + b_fc        # (r, 4D)
        h = h * jax.nn.sigmoid(1.702 * h)                             # QuickGELU
        return jnp.dot(h.astype(jnp.bfloat16), wproj_ref[...],
                       preferred_element_type=jnp.float32) + b_proj   # (r, D)

    if mlp_rows >= S:
        # Default: full (S, 4D) hidden, no accumulator, full-depth contractions.
        o_ref[0] = (x1 + mlp_of(x2n_bf)).astype(o_ref.dtype)
    else:
        # Row-chunked MLP (only when (S, 4D) f32 hidden would not fit VMEM):
        # each row tile sees the full 4D hidden, no f32 accumulator RMW.
        for r0 in range(0, S, mlp_rows):
            r1 = min(r0 + mlp_rows, S)
            o_ref[0, r0:r1, :] = (x1[r0:r1] + mlp_of(x2n_bf[r0:r1])
                                  ).astype(o_ref.dtype)


def _pick_heads_per_group(n_head, head_dim):
    """Smallest divisor g of n_head with g*head_dim a multiple of 128 lanes."""
    for g in range(1, n_head + 1):
        if n_head % g == 0 and (g * head_dim) % 128 == 0:
            return g
    return 1


def _vmem_estimate(S, D, g, io_itemsize, mlp_rows):
    """Rough per-core VMEM footprint in bytes (single-buffered weights)."""
    f32, bf16 = 4, 2
    weights = bf16 * 12 * D * D + f32 * 13 * D           # bf16 mats + f32 vecs
    io = 2 * 2 * S * D * io_itemsize                     # x / out blocks, 2 bufs
    scratch = bf16 * 4 * S * D                           # qkv (S,3D) + attn (S,D)
    act_f32 = f32 * (7 * S * D                           # x, xn, attn, x1, x2n, out
                     + 3 * S * D                         # qkv f32 value
                     + 2 * g * S * S                     # per-group scores + probs
                     + 2 * mlp_rows * 4 * D)             # hidden + gelu
    act_bf16 = bf16 * (2 * S * D + mlp_rows * 4 * D)     # xn_bf, x2n_bf, h_bf
    return weights + io + scratch + act_f32 + act_bf16 + (4 << 20)


def residual_attention_block(x, params, *, n_head):
    """x: (B, S, D). params: dict of weights (see init_params)."""
    B, S, D = x.shape
    assert D % n_head == 0, "d_model must be divisible by n_head"
    hd = D // n_head
    g = _pick_heads_per_group(n_head, hd)

    # ---- VMEM budget / decide MLP row chunking ----
    try:
        vmem_cap = int(getattr(pltpu.get_tpu_info(), "vmem_capacity_bytes",
                               64 * 1024 * 1024))
    except Exception:
        vmem_cap = 64 * 1024 * 1024                      # v7x per-TC floor
    budget = int(0.9 * vmem_cap)
    itemsize = jnp.dtype(x.dtype).itemsize

    mlp_rows = S                                         # default: no chunking
    est = _vmem_estimate(S, D, g, itemsize, mlp_rows)
    if est > budget:
        fitted = False
        for cand in (512, 256, 128, 64, 32, 16, 8):
            if cand >= S:
                continue
            est_c = _vmem_estimate(S, D, g, itemsize, cand)
            if est_c <= budget:
                mlp_rows, est, fitted = cand, est_c, True
                break
        if not fitted:
            raise ValueError(
                "ResidualAttentionBlock kernel does not fit VMEM even with MLP "
                f"row chunking (need ~{est} B, budget {budget} B); re-tile.")
    vmem_limit = int(min(max(est, 16 << 20), budget))

    kern = functools.partial(_block_kernel, d_model=D, n_head=n_head,
                             heads_per_group=g, mlp_rows=mlp_rows)

    # Weights / biases / LN params: whole array resident in VMEM, copied once
    # (no double-buffering of constant-index blocks).
    resident = pl.BlockSpec(memory_space=pltpu.MemorySpace.VMEM)

    in_specs = [
        pl.BlockSpec((1, S, D), lambda b: (b, 0, 0)),    # x (pipelined over B)
        resident, resident,                              # ln1 gamma / beta (f32)
        resident, resident,                              # in_proj W (bf16, pre-T), b
        resident, resident,                              # out_proj W (bf16, pre-T), b
        resident, resident,                              # ln2 gamma / beta (f32)
        resident, resident,                              # c_fc W (bf16, pre-T), b
        resident, resident,                              # c_proj W (bf16, pre-T), b
    ]
    out_spec = pl.BlockSpec((1, S, D), lambda b: (b, 0, 0))

    return pl.pallas_call(
        kern,
        out_shape=jax.ShapeDtypeStruct((B, S, D), x.dtype),
        grid=(B,),
        in_specs=in_specs,
        out_specs=out_spec,
        scratch_shapes=[pltpu.VMEM((S, 3 * D), jnp.bfloat16),   # scaled-q | k | v
                        pltpu.VMEM((S, D), jnp.bfloat16)],      # head outputs
        compiler_params=pltpu.CompilerParams(
            dimension_semantics=("parallel",),
            vmem_limit_bytes=vmem_limit),
    )(x,
      params["ln1_g"], params["ln1_b"],
      params["w_qkv"], params["b_qkv"],
      params["w_out"], params["b_out"],
      params["ln2_g"], params["ln2_b"],
      params["w_fc"], params["b_fc"],
      params["w_proj"], params["b_proj"])


def init_params(key, d_model):
    """Deterministic synthetic parameters with the module's shapes.

    PyTorch stores linear weights as (out, in) and computes x @ W.T; here we
    store the already-transposed (in, out) matrices so the kernel does x @ W.
    Weight matrices are bfloat16 (MXU inputs); biases / LN params stay float32.
    1-D vectors are stored as (1, N) so they map cleanly onto VMEM.
    """
    D = d_model
    ks = jax.random.split(key, 6)
    s = 0.02
    bf = jnp.bfloat16
    return {
        "ln1_g": jnp.ones((1, D), jnp.float32),
        "ln1_b": jnp.zeros((1, D), jnp.float32),
        "w_qkv": (s * jax.random.normal(ks[0], (D, 3 * D), jnp.float32)).astype(bf),
        "b_qkv": s * jax.random.normal(ks[1], (1, 3 * D), jnp.float32),
        "w_out": (s * jax.random.normal(ks[2], (D, D), jnp.float32)).astype(bf),
        "b_out": jnp.zeros((1, D), jnp.float32),
        "ln2_g": jnp.ones((1, D), jnp.float32),
        "ln2_b": jnp.zeros((1, D), jnp.float32),
        "w_fc": (s * jax.random.normal(ks[3], (D, 4 * D), jnp.float32)).astype(bf),
        "b_fc": s * jax.random.normal(ks[4], (1, 4 * D), jnp.float32),
        "w_proj": (s * jax.random.normal(ks[5], (4 * D, D), jnp.float32)).astype(bf),
        "b_proj": jnp.zeros((1, D), jnp.float32),
    }


def reference(x, params, *, n_head):
    """Pure-JAX f32 reference mirroring PyTorch semantics (attn_mask=None)."""
    B, S, D = x.shape
    hd = D // n_head
    scale = 1.0 / math.sqrt(hd)
    f32 = lambda a: a.astype(jnp.float32)

    def ln(v, g, b):
        mu = jnp.mean(v, -1, keepdims=True)
        var = jnp.mean((v - mu) ** 2, -1, keepdims=True)
        return (v - mu) / jnp.sqrt(var + 1e-5) * g + b

    xn = ln(x, params["ln1_g"][0], params["ln1_b"][0])
    qkv = xn @ f32(params["w_qkv"]) + params["b_qkv"][0]
    q, k, v = jnp.split(qkv, 3, axis=-1)
    q = q.reshape(B, S, n_head, hd).transpose(0, 2, 1, 3) * scale
    k = k.reshape(B, S, n_head, hd).transpose(0, 2, 1, 3)
    v = v.reshape(B, S, n_head, hd).transpose(0, 2, 1, 3)
    s = jnp.einsum("bhqd,bhkd->bhqk", q, k)
    p = jax.nn.softmax(s, axis=-1)
    a = jnp.einsum("bhqk,bhkd->bhqd", p, v).transpose(0, 2, 1, 3).reshape(B, S, D)
    a = a @ f32(params["w_out"]) + params["b_out"][0]
    x1 = x + a
    x2 = ln(x1, params["ln2_g"][0], params["ln2_b"][0])
    h = x2 @ f32(params["w_fc"]) + params["b_fc"][0]
    h = h * jax.nn.sigmoid(1.702 * h)
    m = h @ f32(params["w_proj"]) + params["b_proj"][0]
    return x1 + m


if __name__ == "__main__":
    # Small sanity shapes (batch=2, seq=8, d_model=32, heads=4).
    # TODO(synk): real ViT shapes (S=197/257, D=768/1024, H=12/16) exercise the
    # 128-lane head-pair path; validate those on hardware / interpret mode too.
    B, S, D, H = 2, 8, 32, 4
    key = jax.random.PRNGKey(0)
    kx, kp = jax.random.split(key)
    x = jax.random.normal(kx, (B, S, D), jnp.float32)
    params = init_params(kp, D)

    out = residual_attention_block(x, params, n_head=H)
    out = jax.block_until_ready(out)

    ref = reference(x, params, n_head=H)
    assert out.shape == (B, S, D)
    # bf16 MXU inputs (f32 accumulation) + approx softmax reciprocal vs f32 ref.
    assert jnp.allclose(out, ref, atol=2e-2, rtol=2e-2), "mismatch vs reference"

    print("KERNEL_OK")
</pallas_src>

<mosaic_0001>
module attributes {stable_mosaic.version = 11 : i64} {
  func.func @_block_kernel(%arg0: i32, %arg1: memref<1x8x32xf32, #tpu.memory_space<vmem>>, %arg2: memref<1x32xf32, #tpu.memory_space<vmem>>, %arg3: memref<1x32xf32, #tpu.memory_space<vmem>>, %arg4: memref<32x96xbf16, #tpu.memory_space<vmem>>, %arg5: memref<1x96xf32, #tpu.memory_space<vmem>>, %arg6: memref<32x32xbf16, #tpu.memory_space<vmem>>, %arg7: memref<1x32xf32, #tpu.memory_space<vmem>>, %arg8: memref<1x32xf32, #tpu.memory_space<vmem>>, %arg9: memref<1x32xf32, #tpu.memory_space<vmem>>, %arg10: memref<32x128xbf16, #tpu.memory_space<vmem>>, %arg11: memref<1x128xf32, #tpu.memory_space<vmem>>, %arg12: memref<128x32xbf16, #tpu.memory_space<vmem>>, %arg13: memref<1x32xf32, #tpu.memory_space<vmem>>, %arg14: memref<1x8x32xf32, #tpu.memory_space<vmem>>, %arg15: memref<8x96xbf16, #tpu.memory_space<vmem>>, %arg16: memref<8x32xbf16, #tpu.memory_space<vmem>>) attributes {dimension_semantics = [#tpu.dimension_semantics<parallel>], iteration_bounds = array<i64: 2>, scalar_prefetch = 0 : i64, scratch_operands = 2 : i64, tpu.core_type = #tpu.core_type<tc>, window_params = [{transform_indices = @transform_0, window_bounds = array<i64: 1, 8, 32>}, {pipeline_mode = #tpu.pipeline_mode<synchronous>, transform_indices = @transform_1, window_bounds = array<i64: 1, 32>}, {pipeline_mode = #tpu.pipeline_mode<synchronous>, transform_indices = @transform_2, window_bounds = array<i64: 1, 32>}, {pipeline_mode = #tpu.pipeline_mode<synchronous>, transform_indices = @transform_3, window_bounds = array<i64: 32, 96>}, {pipeline_mode = #tpu.pipeline_mode<synchronous>, transform_indices = @transform_4, window_bounds = array<i64: 1, 96>}, {pipeline_mode = #tpu.pipeline_mode<synchronous>, transform_indices = @transform_5, window_bounds = array<i64: 32, 32>}, {pipeline_mode = #tpu.pipeline_mode<synchronous>, transform_indices = @transform_6, window_bounds = array<i64: 1, 32>}, {pipeline_mode = #tpu.pipeline_mode<synchronous>, transform_indices = @transform_7, window_bounds = array<i64: 1, 32>}, {pipeline_mode = #tpu.pipeline_mode<synchronous>, transform_indices = @transform_8, window_bounds = array<i64: 1, 32>}, {pipeline_mode = #tpu.pipeline_mode<synchronous>, transform_indices = @transform_9, window_bounds = array<i64: 32, 128>}, {pipeline_mode = #tpu.pipeline_mode<synchronous>, transform_indices = @transform_10, window_bounds = array<i64: 1, 128>}, {pipeline_mode = #tpu.pipeline_mode<synchronous>, transform_indices = @transform_11, window_bounds = array<i64: 128, 32>}, {pipeline_mode = #tpu.pipeline_mode<synchronous>, transform_indices = @transform_12, window_bounds = array<i64: 1, 32>}, {transform_indices = @transform_13, window_bounds = array<i64: 1, 8, 32>}]} {
    %c0 = arith.constant 0 : index
    %c0_0 = arith.constant 0 : index
    %c0_1 = arith.constant 0 : index
    %0 = vector.load %arg1[%c0, %c0_0, %c0_1] : memref<1x8x32xf32, #tpu.memory_space<vmem>>, vector<1x8x32xf32>
    %1 = vector.shape_cast %0 : vector<1x8x32xf32> to vector<8x32xf32>
    %c0_2 = arith.constant 0 : index
    %c0_3 = arith.constant 0 : index
    %2 = vector.load %arg2[%c0_2, %c0_3] : memref<1x32xf32, #tpu.memory_space<vmem>>, vector<1x32xf32>
    %3 = vector.shape_cast %2 : vector<1x32xf32> to vector<32xf32>
    %c0_4 = arith.constant 0 : index
    %c0_5 = arith.constant 0 : index
    %4 = vector.load %arg3[%c0_4, %c0_5] : memref<1x32xf32, #tpu.memory_space<vmem>>, vector<1x32xf32>
    %5 = vector.shape_cast %4 : vector<1x32xf32> to vector<32xf32>
    %cst = arith.constant dense<0.000000e+00> : vector<8xf32>
    %6 = vector.multi_reduction <add>, %1, %cst [1] : vector<8x32xf32> to vector<8xf32>
    %7 = vector.shape_cast %6 : vector<8xf32> to vector<8x1xf32>
    %cst_6 = arith.constant 3.200000e+01 : f32
    %8 = vector.broadcast %cst_6 : f32 to vector<8x1xf32>
    %9 = arith.divf %7, %8 : vector<8x1xf32>
    %10 = vector.broadcast %9 : vector<8x1xf32> to vector<8x32xf32>
    %11 = arith.subf %1, %10 : vector<8x32xf32>
    %12 = arith.mulf %11, %11 : vector<8x32xf32>
    %cst_7 = arith.constant dense<0.000000e+00> : vector<8xf32>
    %13 = vector.multi_reduction <add>, %12, %cst_7 [1] : vector<8x32xf32> to vector<8xf32>
    %14 = vector.shape_cast %13 : vector<8xf32> to vector<8x1xf32>
    %cst_8 = arith.constant 3.200000e+01 : f32
    %15 = vector.broadcast %cst_8 : f32 to vector<8x1xf32>
    %16 = arith.divf %14, %15 : vector<8x1xf32>
    %17 = vector.broadcast %9 : vector<8x1xf32> to vector<8x32xf32>
    %18 = arith.subf %1, %17 : vector<8x32xf32>
    %cst_9 = arith.constant 9.99999974E-6 : f32
    %19 = vector.broadcast %cst_9 : f32 to vector<8x1xf32>
    %20 = arith.addf %16, %19 : vector<8x1xf32>
    %21 = math.rsqrt %20 : vector<8x1xf32>
    %22 = vector.broadcast %21 : vector<8x1xf32> to vector<8x32xf32>
    %23 = arith.mulf %18, %22 : vector<8x32xf32>
    %24 = vector.shape_cast %3 : vector<32xf32> to vector<1x32xf32>
    %25 = vector.broadcast %24 : vector<1x32xf32> to vector<8x32xf32>
    %26 = arith.mulf %23, %25 : vector<8x32xf32>
    %27 = vector.shape_cast %5 : vector<32xf32> to vector<1x32xf32>
    %28 = vector.broadcast %27 : vector<1x32xf32> to vector<8x32xf32>
    %29 = arith.addf %26, %28 : vector<8x32xf32>
    %30 = arith.truncf %29 : vector<8x32xf32> to vector<8x32xbf16>
    %c0_10 = arith.constant 0 : index
    %c0_11 = arith.constant 0 : index
    %31 = vector.load %arg4[%c0_10, %c0_11] : memref<32x96xbf16, #tpu.memory_space<vmem>>, vector<32x96xbf16>
    %cst_12 = arith.constant dense<0.000000e+00> : vector<8x96xf32>
    %32 = tpu.matmul %30, %31, %cst_12 {dimension_numbers = #tpu.dot_dimension_numbers<[1], [0], [0], [1], [0, 0, 1, 1], [], []>} : vector<8x32xbf16>, vector<32x96xbf16>, vector<8x96xf32> -> vector<8x96xf32>
    %c0_13 = arith.constant 0 : index
    %c0_14 = arith.constant 0 : index
    %33 = vector.load %arg5[%c0_13, %c0_14] : memref<1x96xf32, #tpu.memory_space<vmem>>, vector<1x96xf32>
    %34 = vector.shape_cast %33 : vector<1x96xf32> to vector<96xf32>
    %35 = vector.shape_cast %34 : vector<96xf32> to vector<1x96xf32>
    %36 = vector.broadcast %35 : vector<1x96xf32> to vector<8x96xf32>
    %37 = arith.addf %32, %36 : vector<8x96xf32>
    %38 = vector.extract_strided_slice %37 {offsets = [0, 0], sizes = [8, 32], strides = [1, 1]} : vector<8x96xf32> to vector<8x32xf32>
    %cst_15 = arith.constant 0.353553385 : f32
    %39 = vector.broadcast %cst_15 : f32 to vector<8x32xf32>
    %40 = arith.mulf %38, %39 : vector<8x32xf32>
    %41 = arith.truncf %40 : vector<8x32xf32> to vector<8x32xbf16>
    %c0_16 = arith.constant 0 : index
    %c0_17 = arith.constant 0 : index
    %42 = vector.load %arg15[%c0_16, %c0_17] : memref<8x96xbf16, #tpu.memory_space<vmem>>, vector<8x32xbf16>
    tpu.vector_store %arg15[%c0_16, %c0_17], %41 {strides = array<i32>} : memref<8x96xbf16, #tpu.memory_space<vmem>>, vector<8x32xbf16>,
    %43 = vector.extract_strided_slice %37 {offsets = [0, 32], sizes = [8, 64], strides = [1, 1]} : vector<8x96xf32> to vector<8x64xf32>
    %44 = arith.truncf %43 : vector<8x64xf32> to vector<8x64xbf16>
    %c0_18 = arith.constant 0 : index
    %c32 = arith.constant 32 : index
    %45 = vector.load %arg15[%c0_18, %c32] : memref<8x96xbf16, #tpu.memory_space<vmem>>, vector<8x64xbf16>
    tpu.vector_store %arg15[%c0_18, %c32], %44 {strides = array<i32>} : memref<8x96xbf16, #tpu.memory_space<vmem>>, vector<8x64xbf16>,
    %c0_19 = arith.constant 0 : index
    %c0_20 = arith.constant 0 : index
    %46 = vector.load %arg15[%c0_19, %c0_20] : memref<8x96xbf16, #tpu.memory_space<vmem>>, vector<8x8xbf16>
    %c0_21 = arith.constant 0 : index
    %c32_22 = arith.constant 32 : index
    %47 = vector.load %arg15[%c0_21, %c32_22] : memref<8x96xbf16, #tpu.memory_space<vmem>>, vector<8x8xbf16>
    %c0_23 = arith.constant 0 : index
    %c64 = arith.constant 64 : index
    %48 = vector.load %arg15[%c0_23, %c64] : memref<8x96xbf16, #tpu.memory_space<vmem>>, vector<8x8xbf16>
    %cst_24 = arith.constant dense<0.000000e+00> : vector<8x8xf32>
    %49 = tpu.matmul %46, %47, %cst_24 {dimension_numbers = #tpu.dot_dimension_numbers<[1], [1], [0], [0], [0, 0, 1, 0], [], []>} : vector<8x8xbf16>, vector<8x8xbf16>, vector<8x8xf32> -> vector<8x8xf32>
    %cst_25 = arith.constant dense<0xFF800000> : vector<8xf32>
    %50 = vector.multi_reduction <maximumf>, %49, %cst_25 [1] : vector<8x8xf32> to vector<8xf32>
    %51 = vector.shape_cast %50 : vector<8xf32> to vector<8x1xf32>
    %52 = vector.broadcast %51 : vector<8x1xf32> to vector<8x8xf32>
    %53 = arith.subf %49, %52 : vector<8x8xf32>
    %54 = math.exp %53 : vector<8x8xf32>
    %cst_26 = arith.constant dense<0.000000e+00> : vector<8xf32>
    %55 = vector.multi_reduction <add>, %54, %cst_26 [1] : vector<8x8xf32> to vector<8xf32>
    %56 = vector.shape_cast %55 : vector<8xf32> to vector<8x1xf32>
    %57 = tpu.reciprocal %56 {approx = true} : vector<8x1xf32> -> vector<8x1xf32>
    %58 = vector.broadcast %57 : vector<8x1xf32> to vector<8x8xf32>
    %59 = arith.mulf %54, %58 : vector<8x8xf32>
    %60 = arith.truncf %59 : vector<8x8xf32> to vector<8x8xbf16>
    %cst_27 = arith.constant dense<0.000000e+00> : vector<8x8xf32>
    %61 = tpu.matmul %60, %48, %cst_27 {dimension_numbers = #tpu.dot_dimension_numbers<[1], [0], [0], [1], [0, 0, 1, 1], [], []>} : vector<8x8xbf16>, vector<8x8xbf16>, vector<8x8xf32> -> vector<8x8xf32>
    %62 = arith.truncf %61 : vector<8x8xf32> to vector<8x8xbf16>
    %c0_28 = arith.constant 0 : index
    %c0_29 = arith.constant 0 : index
    %63 = vector.load %arg16[%c0_28, %c0_29] : memref<8x32xbf16, #tpu.memory_space<vmem>>, vector<8x8xbf16>
    tpu.vector_store %arg16[%c0_28, %c0_29], %62 {strides = array<i32>} : memref<8x32xbf16, #tpu.memory_space<vmem>>, vector<8x8xbf16>,
    %c0_30 = arith.constant 0 : index
    %c8 = arith.constant 8 : index
    %64 = vector.load %arg15[%c0_30, %c8] : memref<8x96xbf16, #tpu.memory_space<vmem>>, vector<8x8xbf16>
    %c0_31 = arith.constant 0 : index
    %c40 = arith.constant 40 : index
    %65 = vector.load %arg15[%c0_31, %c40] : memref<8x96xbf16, #tpu.memory_space<vmem>>, vector<8x8xbf16>
    %c0_32 = arith.constant 0 : index
    %c72 = arith.constant 72 : index
    %66 = vector.load %arg15[%c0_32, %c72] : memref<8x96xbf16, #tpu.memory_space<vmem>>, vector<8x8xbf16>
    %cst_33 = arith.constant dense<0.000000e+00> : vector<8x8xf32>
    %67 = tpu.matmul %64, %65, %cst_33 {dimension_numbers = #tpu.dot_dimension_numbers<[1], [1], [0], [0], [0, 0, 1, 0], [], []>} : vector<8x8xbf16>, vector<8x8xbf16>, vector<8x8xf32> -> vector<8x8xf32>
    %cst_34 = arith.constant dense<0xFF800000> : vector<8xf32>
    %68 = vector.multi_reduction <maximumf>, %67, %cst_34 [1] : vector<8x8xf32> to vector<8xf32>
    %69 = vector.shape_cast %68 : vector<8xf32> to vector<8x1xf32>
    %70 = vector.broadcast %69 : vector<8x1xf32> to vector<8x8xf32>
    %71 = arith.subf %67, %70 : vector<8x8xf32>
    %72 = math.exp %71 : vector<8x8xf32>
    %cst_35 = arith.constant dense<0.000000e+00> : vector<8xf32>
    %73 = vector.multi_reduction <add>, %72, %cst_35 [1] : vector<8x8xf32> to vector<8xf32>
    %74 = vector.shape_cast %73 : vector<8xf32> to vector<8x1xf32>
    %75 = tpu.reciprocal %74 {approx = true} : vector<8x1xf32> -> vector<8x1xf32>
    %76 = vector.broadcast %75 : vector<8x1xf32> to vector<8x8xf32>
    %77 = arith.mulf %72, %76 : vector<8x8xf32>
    %78 = arith.truncf %77 : vector<8x8xf32> to vector<8x8xbf16>
    %cst_36 = arith.constant dense<0.000000e+00> : vector<8x8xf32>
    %79 = tpu.matmul %78, %66, %cst_36 {dimension_numbers = #tpu.dot_dimension_numbers<[1], [0], [0], [1], [0, 0, 1, 1], [], []>} : vector<8x8xbf16>, vector<8x8xbf16>, vector<8x8xf32> -> vector<8x8xf32>
    %80 = arith.truncf %79 : vector<8x8xf32> to vector<8x8xbf16>
    %c0_37 = arith.constant 0 : index
    %c8_38 = arith.constant 8 : index
    %81 = vector.load %arg16[%c0_37, %c8_38] : memref<8x32xbf16, #tpu.memory_space<vmem>>, vector<8x8xbf16>
    tpu.vector_store %arg16[%c0_37, %c8_38], %80 {strides = array<i32>} : memref<8x32xbf16, #tpu.memory_space<vmem>>, vector<8x8xbf16>,
    %c0_39 = arith.constant 0 : index
    %c16 = arith.constant 16 : index
    %82 = vector.load %arg15[%c0_39, %c16] : memref<8x96xbf16, #tpu.memory_space<vmem>>, vector<8x8xbf16>
    %c0_40 = arith.constant 0 : index
    %c48 = arith.constant 48 : index
    %83 = vector.load %arg15[%c0_40, %c48] : memref<8x96xbf16, #tpu.memory_space<vmem>>, vector<8x8xbf16>
    %c0_41 = arith.constant 0 : index
    %c80 = arith.constant 80 : index
    %84 = vector.load %arg15[%c0_41, %c80] : memref<8x96xbf16, #tpu.memory_space<vmem>>, vector<8x8xbf16>
    %cst_42 = arith.constant dense<0.000000e+00> : vector<8x8xf32>
    %85 = tpu.matmul %82, %83, %cst_42 {dimension_numbers = #tpu.dot_dimension_numbers<[1], [1], [0], [0], [0, 0, 1, 0], [], []>} : vector<8x8xbf16>, vector<8x8xbf16>, vector<8x8xf32> -> vector<8x8xf32>
    %cst_43 = arith.constant dense<0xFF800000> : vector<8xf32>
    %86 = vector.multi_reduction <maximumf>, %85, %cst_43 [1] : vector<8x8xf32> to vector<8xf32>
    %87 = vector.shape_cast %86 : vector<8xf32> to vector<8x1xf32>
    %88 = vector.broadcast %87 : vector<8x1xf32> to vector<8x8xf32>
    %89 = arith.subf %85, %88 : vector<8x8xf32>
    %90 = math.exp %89 : vector<8x8xf32>
    %cst_44 = arith.constant dense<0.000000e+00> : vector<8xf32>
    %91 = vector.multi_reduction <add>, %90, %cst_44 [1] : vector<8x8xf32> to vector<8xf32>
    %92 = vector.shape_cast %91 : vector<8xf32> to vector<8x1xf32>
    %93 = tpu.reciprocal %92 {approx = true} : vector<8x1xf32> -> vector<8x1xf32>
    %94 = vector.broadcast %93 : vector<8x1xf32> to vector<8x8xf32>
    %95 = arith.mulf %90, %94 : vector<8x8xf32>
    %96 = arith.truncf %95 : vector<8x8xf32> to vector<8x8xbf16>
    %cst_45 = arith.constant dense<0.000000e+00> : vector<8x8xf32>
    %97 = tpu.matmul %96, %84, %cst_45 {dimension_numbers = #tpu.dot_dimension_numbers<[1], [0], [0], [1], [0, 0, 1, 1], [], []>} : vector<8x8xbf16>, vector<8x8xbf16>, vector<8x8xf32> -> vector<8x8xf32>
    %98 = arith.truncf %97 : vector<8x8xf32> to vector<8x8xbf16>
    %c0_46 = arith.constant 0 : index
    %c16_47 = arith.constant 16 : index
    %99 = vector.load %arg16[%c0_46, %c16_47] : memref<8x32xbf16, #tpu.memory_space<vmem>>, vector<8x8xbf16>
    tpu.vector_store %arg16[%c0_46, %c16_47], %98 {strides = array<i32>} : memref<8x32xbf16, #tpu.memory_space<vmem>>, vector<8x8xbf16>,
    %c0_48 = arith.constant 0 : index
    %c24 = arith.constant 24 : index
    %100 = vector.load %arg15[%c0_48, %c24] : memref<8x96xbf16, #tpu.memory_space<vmem>>, vector<8x8xbf16>
    %c0_49 = arith.constant 0 : index
    %c56 = arith.constant 56 : index
    %101 = vector.load %arg15[%c0_49, %c56] : memref<8x96xbf16, #tpu.memory_space<vmem>>, vector<8x8xbf16>
    %c0_50 = arith.constant 0 : index
    %c88 = arith.constant 88 : index
    %102 = vector.load %arg15[%c0_50, %c88] : memref<8x96xbf16, #tpu.memory_space<vmem>>, vector<8x8xbf16>
    %cst_51 = arith.constant dense<0.000000e+00> : vector<8x8xf32>
    %103 = tpu.matmul %100, %101, %cst_51 {dimension_numbers = #tpu.dot_dimension_numbers<[1], [1], [0], [0], [0, 0, 1, 0], [], []>} : vector<8x8xbf16>, vector<8x8xbf16>, vector<8x8xf32> -> vector<8x8xf32>
    %cst_52 = arith.constant dense<0xFF800000> : vector<8xf32>
    %104 = vector.multi_reduction <maximumf>, %103, %cst_52 [1] : vector<8x8xf32> to vector<8xf32>
    %105 = vector.shape_cast %104 : vector<8xf32> to vector<8x1xf32>
    %106 = vector.broadcast %105 : vector<8x1xf32> to vector<8x8xf32>
    %107 = arith.subf %103, %106 : vector<8x8xf32>
    %108 = math.exp %107 : vector<8x8xf32>
    %cst_53 = arith.constant dense<0.000000e+00> : vector<8xf32>
    %109 = vector.multi_reduction <add>, %108, %cst_53 [1] : vector<8x8xf32> to vector<8xf32>
    %110 = vector.shape_cast %109 : vector<8xf32> to vector<8x1xf32>
    %111 = tpu.reciprocal %110 {approx = true} : vector<8x1xf32> -> vector<8x1xf32>
    %112 = vector.broadcast %111 : vector<8x1xf32> to vector<8x8xf32>
    %113 = arith.mulf %108, %112 : vector<8x8xf32>
    %114 = arith.truncf %113 : vector<8x8xf32> to vector<8x8xbf16>
    %cst_54 = arith.constant dense<0.000000e+00> : vector<8x8xf32>
    %115 = tpu.matmul %114, %102, %cst_54 {dimension_numbers = #tpu.dot_dimension_numbers<[1], [0], [0], [1], [0, 0, 1, 1], [], []>} : vector<8x8xbf16>, vector<8x8xbf16>, vector<8x8xf32> -> vector<8x8xf32>
    %116 = arith.truncf %115 : vector<8x8xf32> to vector<8x8xbf16>
    %c0_55 = arith.constant 0 : index
    %c24_56 = arith.constant 24 : index
    %117 = vector.load %arg16[%c0_55, %c24_56] : memref<8x32xbf16, #tpu.memory_space<vmem>>, vector<8x8xbf16>
    tpu.vector_store %arg16[%c0_55, %c24_56], %116 {strides = array<i32>} : memref<8x32xbf16, #tpu.memory_space<vmem>>, vector<8x8xbf16>,
    %c0_57 = arith.constant 0 : index
    %c0_58 = arith.constant 0 : index
    %118 = vector.load %arg16[%c0_57, %c0_58] : memref<8x32xbf16, #tpu.memory_space<vmem>>, vector<8x32xbf16>
    %c0_59 = arith.constant 0 : index
    %c0_60 = arith.constant 0 : index
    %119 = vector.load %arg6[%c0_59, %c0_60] : memref<32x32xbf16, #tpu.memory_space<vmem>>, vector<32x32xbf16>
    %cst_61 = arith.constant dense<0.000000e+00> : vector<8x32xf32>
    %120 = tpu.matmul %118, %119, %cst_61 {dimension_numbers = #tpu.dot_dimension_numbers<[1], [0], [0], [1], [0, 0, 1, 1], [], []>} : vector<8x32xbf16>, vector<32x32xbf16>, vector<8x32xf32> -> vector<8x32xf32>
    %c0_62 = arith.constant 0 : index
    %c0_63 = arith.constant 0 : index
    %121 = vector.load %arg7[%c0_62, %c0_63] : memref<1x32xf32, #tpu.memory_space<vmem>>, vector<1x32xf32>
    %122 = vector.shape_cast %121 : vector<1x32xf32> to vector<32xf32>
    %123 = vector.shape_cast %122 : vector<32xf32> to vector<1x32xf32>
    %124 = vector.broadcast %123 : vector<1x32xf32> to vector<8x32xf32>
    %125 = arith.addf %120, %124 : vector<8x32xf32>
    %126 = arith.addf %1, %125 : vector<8x32xf32>
    %c0_64 = arith.constant 0 : index
    %c0_65 = arith.constant 0 : index
    %127 = vector.load %arg8[%c0_64, %c0_65] : memref<1x32xf32, #tpu.memory_space<vmem>>, vector<1x32xf32>
    %128 = vector.shape_cast %127 : vector<1x32xf32> to vector<32xf32>
    %c0_66 = arith.constant 0 : index
    %c0_67 = arith.constant 0 : index
    %129 = vector.load %arg9[%c0_66, %c0_67] : memref<1x32xf32, #tpu.memory_space<vmem>>, vector<1x32xf32>
    %130 = vector.shape_cast %129 : vector<1x32xf32> to vector<32xf32>
    %cst_68 = arith.constant dense<0.000000e+00> : vector<8xf32>
    %131 = vector.multi_reduction <add>, %126, %cst_68 [1] : vector<8x32xf32> to vector<8xf32>
    %132 = vector.shape_cast %131 : vector<8xf32> to vector<8x1xf32>
    %cst_69 = arith.constant 3.200000e+01 : f32
    %133 = vector.broadcast %cst_69 : f32 to vector<8x1xf32>
    %134 = arith.divf %132, %133 : vector<8x1xf32>
    %135 = vector.broadcast %134 : vector<8x1xf32> to vector<8x32xf32>
    %136 = arith.subf %126, %135 : vector<8x32xf32>
    %137 = arith.mulf %136, %136 : vector<8x32xf32>
    %cst_70 = arith.constant dense<0.000000e+00> : vector<8xf32>
    %138 = vector.multi_reduction <add>, %137, %cst_70 [1] : vector<8x32xf32> to vector<8xf32>
    %139 = vector.shape_cast %138 : vector<8xf32> to vector<8x1xf32>
    %cst_71 = arith.constant 3.200000e+01 : f32
    %140 = vector.broadcast %cst_71 : f32 to vector<8x1xf32>
    %141 = arith.divf %139, %140 : vector<8x1xf32>
    %142 = vector.broadcast %134 : vector<8x1xf32> to vector<8x32xf32>
    %143 = arith.subf %126, %142 : vector<8x32xf32>
    %cst_72 = arith.constant 9.99999974E-6 : f32
    %144 = vector.broadcast %cst_72 : f32 to vector<8x1xf32>
    %145 = arith.addf %141, %144 : vector<8x1xf32>
    %146 = math.rsqrt %145 : vector<8x1xf32>
    %147 = vector.broadcast %146 : vector<8x1xf32> to vector<8x32xf32>
    %148 = arith.mulf %143, %147 : vector<8x32xf32>
    %149 = vector.shape_cast %128 : vector<32xf32> to vector<1x32xf32>
    %150 = vector.broadcast %149 : vector<1x32xf32> to vector<8x32xf32>
    %151 = arith.mulf %148, %150 : vector<8x32xf32>
    %152 = vector.shape_cast %130 : vector<32xf32> to vector<1x32xf32>
    %153 = vector.broadcast %152 : vector<1x32xf32> to vector<8x32xf32>
    %154 = arith.addf %151, %153 : vector<8x32xf32>
    %155 = arith.truncf %154 : vector<8x32xf32> to vector<8x32xbf16>
    %c0_73 = arith.constant 0 : index
    %c0_74 = arith.constant 0 : index
    %156 = vector.load %arg11[%c0_73, %c0_74] : memref<1x128xf32, #tpu.memory_space<vmem>>, vector<1x128xf32>
    %157 = vector.shape_cast %156 : vector<1x128xf32> to vector<128xf32>
    %c0_75 = arith.constant 0 : index
    %c0_76 = arith.constant 0 : index
    %158 = vector.load %arg13[%c0_75, %c0_76] : memref<1x32xf32, #tpu.memory_space<vmem>>, vector<1x32xf32>
    %159 = vector.shape_cast %158 : vector<1x32xf32> to vector<32xf32>
    %c0_77 = arith.constant 0 : index
    %c0_78 = arith.constant 0 : index
    %160 = vector.load %arg10[%c0_77, %c0_78] : memref<32x128xbf16, #tpu.memory_space<vmem>>, vector<32x128xbf16>
    %cst_79 = arith.constant dense<0.000000e+00> : vector<8x128xf32>
    %161 = tpu.matmul %155, %160, %cst_79 {dimension_numbers = #tpu.dot_dimension_numbers<[1], [0], [0], [1], [0, 0, 1, 1], [], []>} : vector<8x32xbf16>, vector<32x128xbf16>, vector<8x128xf32> -> vector<8x128xf32>
    %162 = vector.shape_cast %157 : vector<128xf32> to vector<1x128xf32>
    %163 = vector.broadcast %162 : vector<1x128xf32> to vector<8x128xf32>
    %164 = arith.addf %161, %163 : vector<8x128xf32>
    %cst_80 = arith.constant 1.702000e+00 : f32
    %165 = vector.broadcast %cst_80 : f32 to vector<8x128xf32>
    %166 = arith.mulf %165, %164 : vector<8x128xf32>
    %167 = arith.negf %166 : vector<8x128xf32>
    %168 = math.exp %167 : vector<8x128xf32>
    %cst_81 = arith.constant 1.000000e+00 : f32
    %169 = vector.broadcast %cst_81 : f32 to vector<8x128xf32>
    %170 = arith.addf %169, %168 : vector<8x128xf32>
    %171 = arith.divf %169, %170 : vector<8x128xf32>
    %172 = arith.mulf %164, %171 : vector<8x128xf32>
    %173 = arith.truncf %172 : vector<8x128xf32> to vector<8x128xbf16>
    %c0_82 = arith.constant 0 : index
    %c0_83 = arith.constant 0 : index
    %174 = vector.load %arg12[%c0_82, %c0_83] : memref<128x32xbf16, #tpu.memory_space<vmem>>, vector<128x32xbf16>
    %cst_84 = arith.constant dense<0.000000e+00> : vector<8x32xf32>
    %175 = tpu.matmul %173, %174, %cst_84 {dimension_numbers = #tpu.dot_dimension_numbers<[1], [0], [0], [1], [0, 0, 1, 1], [], []>} : vector<8x128xbf16>, vector<128x32xbf16>, vector<8x32xf32> -> vector<8x32xf32>
    %176 = vector.shape_cast %159 : vector<32xf32> to vector<1x32xf32>
    %177 = vector.broadcast %176 : vector<1x32xf32> to vector<8x32xf32>
    %178 = arith.addf %175, %177 : vector<8x32xf32>
    %179 = arith.addf %126, %178 : vector<8x32xf32>
    %c0_85 = arith.constant 0 : index
    %c0_86 = arith.constant 0 : index
    %c0_87 = arith.constant 0 : index
    %180 = vector.load %arg14[%c0_85, %c0_86, %c0_87] : memref<1x8x32xf32, #tpu.memory_space<vmem>>, vector<1x8x32xf32>
    %181 = vector.shape_cast %180 : vector<1x8x32xf32> to vector<8x32xf32>
    %182 = vector.shape_cast %179 : vector<8x32xf32> to vector<1x8x32xf32>
    tpu.vector_store %arg14[%c0_85, %c0_86, %c0_87], %182 {strides = array<i32>} : memref<1x8x32xf32, #tpu.memory_space<vmem>>, vector<1x8x32xf32>,
    return
  }
  func.func @transform_0(%arg0: i32) -> (i32, i32, i32) {
    %c0_i32 = arith.constant 0 : i32
    %c0_i32_0 = arith.constant 0 : i32
    %c0_i32_1 = arith.constant 0 : i32
    return %arg0, %c0_i32, %c0_i32_0 : i32, i32, i32
  }
  func.func @transform_1(%arg0: i32) -> (i32, i32) {
    %c0_i32 = arith.constant 0 : i32
    %c0_i32_0 = arith.constant 0 : i32
    %c0_i32_1 = arith.constant 0 : i32
    return %c0_i32, %c0_i32_0 : i32, i32
  }
  func.func @transform_2(%arg0: i32) -> (i32, i32) {
    %c0_i32 = arith.constant 0 : i32
    %c0_i32_0 = arith.constant 0 : i32
    %c0_i32_1 = arith.constant 0 : i32
    return %c0_i32, %c0_i32_0 : i32, i32
  }
  func.func @transform_3(%arg0: i32) -> (i32, i32) {
    %c0_i32 = arith.constant 0 : i32
    %c0_i32_0 = arith.constant 0 : i32
    %c0_i32_1 = arith.constant 0 : i32
    return %c0_i32, %c0_i32_0 : i32, i32
  }
  func.func @transform_4(%arg0: i32) -> (i32, i32) {
    %c0_i32 = arith.constant 0 : i32
    %c0_i32_0 = arith.constant 0 : i32
    %c0_i32_1 = arith.constant 0 : i32
    return %c0_i32, %c0_i32_0 : i32, i32
  }
  func.func @transform_5(%arg0: i32) -> (i32, i32) {
    %c0_i32 = arith.constant 0 : i32
    %c0_i32_0 = arith.constant 0 : i32
    %c0_i32_1 = arith.constant 0 : i32
    return %c0_i32, %c0_i32_0 : i32, i32
  }
  func.func @transform_6(%arg0: i32) -> (i32, i32) {
    %c0_i32 = arith.constant 0 : i32
    %c0_i32_0 = arith.constant 0 : i32
    %c0_i32_1 = arith.constant 0 : i32
    return %c0_i32, %c0_i32_0 : i32, i32
  }
  func.func @transform_7(%arg0: i32) -> (i32, i32) {
    %c0_i32 = arith.constant 0 : i32
    %c0_i32_0 = arith.constant 0 : i32
    %c0_i32_1 = arith.constant 0 : i32
    return %c0_i32, %c0_i32_0 : i32, i32
  }
  func.func @transform_8(%arg0: i32) -> (i32, i32) {
    %c0_i32 = arith.constant 0 : i32
    %c0_i32_0 = arith.constant 0 : i32
    %c0_i32_1 = arith.constant 0 : i32
    return %c0_i32, %c0_i32_0 : i32, i32
  }
  func.func @transform_9(%arg0: i32) -> (i32, i32) {
    %c0_i32 = arith.constant 0 : i32
    %c0_i32_0 = arith.constant 0 : i32
    %c0_i32_1 = arith.constant 0 : i32
    return %c0_i32, %c0_i32_0 : i32, i32
  }
  func.func @transform_10(%arg0: i32) -> (i32, i32) {
    %c0_i32 = arith.constant 0 : i32
    %c0_i32_0 = arith.constant 0 : i32
    %c0_i32_1 = arith.constant 0 : i32
    return %c0_i32, %c0_i32_0 : i32, i32
  }
  func.func @transform_11(%arg0: i32) -> (i32, i32) {
    %c0_i32 = arith.constant 0 : i32
    %c0_i32_0 = arith.constant 0 : i32
    %c0_i32_1 = arith.constant 0 : i32
    return %c0_i32, %c0_i32_0 : i32, i32
  }
  func.func @transform_12(%arg0: i32) -> (i32, i32) {
    %c0_i32 = arith.constant 0 : i32
    %c0_i32_0 = arith.constant 0 : i32
    %c0_i32_1 = arith.constant 0 : i32
    return %c0_i32, %c0_i32_0 : i32, i32
  }
  func.func @transform_13(%arg0: i32) -> (i32, i32, i32) {
    %c0_i32 = arith.constant 0 : i32
    %c0_i32_0 = arith.constant 0 : i32
    %c0_i32_1 = arith.constant 0 : i32
    return %arg0, %c0_i32, %c0_i32_0 : i32, i32, i32
  }
}

</mosaic_0001>

<llo_original>
// kernel: tpu_custom_call.1
$region0: #{tpu_custom_call.1}
  #allocation0 [shape = 'u32[]', space=smem, size = 0x4, offset = 0x4, fixed_abs, tag = 'smem constant byte address 0x4 - core index']
  #allocation1 [shape = 'u32[144,128]{1,0:T(1,128)}', space=vmem, size = 0x12000, scoped, tag = 'internal scratch']
  #allocation2 [shape = 'bf16[8,96]{1,0:T(8,128)(2,1)}', space=vmem, size = 0x800, scoped, tag = 'scratch operand']
  #allocation3 [shape = 'bf16[8,32]{1,0:T(8,128)(2,1)}', space=vmem, size = 0x800, scoped, tag = 'scratch operand']
  %s0 = inlined_call_operand.vmem [shape: f32[2,8,32], index: 0, kind: input, shape index: {}]
  %s1 = inlined_call_operand.vmem [shape: f32[1,32], index: 1, kind: input, shape index: {}]
  %s2 = inlined_call_operand.vmem [shape: f32[1,32], index: 2, kind: input, shape index: {}]
  %s3 = inlined_call_operand.vmem [shape: bf16[32,96], index: 3, kind: input, shape index: {}]
  %s4 = inlined_call_operand.vmem [shape: f32[1,96], index: 4, kind: input, shape index: {}]
  %s5 = inlined_call_operand.vmem [shape: bf16[32,32], index: 5, kind: input, shape index: {}]
  %s6 = inlined_call_operand.vmem [shape: f32[1,32], index: 6, kind: input, shape index: {}]
  %s7 = inlined_call_operand.vmem [shape: f32[1,32], index: 7, kind: input, shape index: {}]
  %s8 = inlined_call_operand.vmem [shape: f32[1,32], index: 8, kind: input, shape index: {}]
  %s9 = inlined_call_operand.vmem [shape: bf16[32,128], index: 9, kind: input, shape index: {}]
  %s10 = inlined_call_operand.vmem [shape: f32[1,128], index: 10, kind: input, shape index: {}]
  %s11 = inlined_call_operand.vmem [shape: bf16[128,32], index: 11, kind: input, shape index: {}]
  %s12 = inlined_call_operand.vmem [shape: f32[1,32], index: 12, kind: input, shape index: {}]
  %s13 = inlined_call_operand.hbm [shape: f32[2,8,32], index: 13, kind: output, shape index: {}]
  %s14 = sld [smem:[#allocation0]]
  $region85: #{tpu_custom_call.1} parent=0
    _
  %s16 = ssub.s32 1, %s14
  %s17 = scalar_select 0, %s16, %s14
  $region1: #{tpu_custom_call.1} parent=0
    #allocation4 [shape = 'u8[8192]{0}', space=vmem, size = 0x2000, scoped, tag = 'output window, operand 0']
    #allocation5 [shape = 's32[2]{0}', space=sflag, size = 0x8, scoped, tag = 'scoped memory for tpu_custom_call.1']
    %18 = vsyncpa [#allocation5], 0
    %s19 = scalar_lea.sflag [#allocation5], 1
    %20 = vsyncpa %s19, 0
    loop: start=0, step=1, limit=4
    $region2: #{tpu_custom_call.1} parent=1 // loop_pre_header
      _
    $region3: #{tpu_custom_call.1} parent=1 // loop_header
      %s22 = sphi 0, %s26
      %p23 = scmp.ge.s32.totalorder %s22, 4
      %s32 = sphi 0, %s34
      %s35 = sphi 0, %s32
      %s36 = sphi 0, %s35
      %s52 = sphi 0, %s36
      %s56 = sphi 0, %s56
      %s58 = sphi 0, %s56
      %s59 = sphi 0, %s58
      %s73 = sphi 0, %s59
      %s77 = sphi 0, %s77
      %s79 = sphi 0, %s77
      %s80 = sphi 0, %s79
      %s94 = sphi 0, %s80
      %s98 = sphi 0, %s98
      %s100 = sphi 0, %s98
      %s101 = sphi 0, %s100
      %s115 = sphi 0, %s101
      %s119 = sphi 0, %s119
      %s121 = sphi 0, %s119
      %s122 = sphi 0, %s121
      %s136 = sphi 0, %s122
      %s140 = sphi 0, %s140
      %s142 = sphi 0, %s140
      %s143 = sphi 0, %s142
      %s157 = sphi 0, %s143
      %s161 = sphi 0, %s161
      %s163 = sphi 0, %s161
      %s164 = sphi 0, %s163
      %s178 = sphi 0, %s164
      %s182 = sphi 0, %s182
      %s184 = sphi 0, %s182
      %s185 = sphi 0, %s184
      %s199 = sphi 0, %s185
      %s203 = sphi 0, %s203
      %s205 = sphi 0, %s203
      %s206 = sphi 0, %s205
      %s220 = sphi 0, %s206
      %s224 = sphi 0, %s224
      %s226 = sphi 0, %s224
      %s227 = sphi 0, %s226
      %s241 = sphi 0, %s227
      %s245 = sphi 0, %s245
      %s247 = sphi 0, %s245
      %s248 = sphi 0, %s247
      %s262 = sphi 0, %s248
      %s266 = sphi 0, %s266
      %s268 = sphi 0, %s266
      %s269 = sphi 0, %s268
      %s283 = sphi 0, %s269
      %s287 = sphi 0, %s287
      %s289 = sphi 0, %s287
      %s290 = sphi 0, %s289
      %s304 = sphi 0, %s290
      %s310 = sphi 0, %s312
      %s313 = sphi 0, %s310
      %s314 = sphi 0, %s313
      %s330 = sphi 0, %s314
    $region4: #{tpu_custom_call.1} parent=1 // loop_header_branch
      %25 = sbr.rel (%p23) target = $region8
    $region5: #{tpu_custom_call.1} parent=1 // loop_body
      %s27 = ssub.s32 %s22, 1
      %s28 = ssub.s32 %s22, 2
      %s29 = sadd.s32 %s22, 1
      %s30 = ssub.s32 %s22, %s29
      %p31 = scmp.eq.s32.totalorder %s30, 0
      %s33 = sadd.s32 %s32, 1
      %s34 = scalar_select %p31, %s32, %s33
      %p37 = pneg %p31
      %p38 = scmp.eq.s32.totalorder %s22, 1
      %p39 = por %p37, %p38
      %p40 = scmp.ne.s32.totalorder %s32, %s35
      %p41 = scmp.eq.s32.totalorder %s22, 0
      %p42 = por %p40, %p41
      %p43 = scmp.ne.s32.totalorder %s32, %s35
      %p44 = scmp.eq.s32.totalorder %s27, 1
      %p45 = por %p43, %p44
      %p46 = scmp.ne.s32.totalorder %s35, %s36
      %p47 = scmp.eq.s32.totalorder %s27, 0
      %p48 = por %p46, %p47
      %p49 = scmp.ne.s32.totalorder %s35, %s36
      %p50 = scmp.eq.s32.totalorder %s28, 1
      %p51 = por %p49, %p50
      %p53 = scmp.ne.s32.totalorder %s36, %s52
      %p54 = scmp.eq.s32.totalorder %s28, 0
      %p55 = por %p53, %p54
      %s57 = sadd.s32 %s56, 1
      %p60 = scmp.eq.s32.totalorder %s22, 1
      %p61 = scmp.ne.s32.totalorder %s56, %s58
      %p62 = scmp.eq.s32.totalorder %s22, 0
      %p63 = por %p61, %p62
      %p64 = scmp.ne.s32.totalorder %s56, %s58
      %p65 = scmp.eq.s32.totalorder %s27, 1
      %p66 = por %p64, %p65
      %p67 = scmp.ne.s32.totalorder %s58, %s59
      %p68 = scmp.eq.s32.totalorder %s27, 0
      %p69 = por %p67, %p68
      %p70 = scmp.ne.s32.totalorder %s58, %s59
      %p71 = scmp.eq.s32.totalorder %s28, 1
      %p72 = por %p70, %p71
      %p74 = scmp.ne.s32.totalorder %s59, %s73
      %p75 = scmp.eq.s32.totalorder %s28, 0
      %p76 = por %p74, %p75
      %s78 = sadd.s32 %s77, 1
      %p81 = scmp.eq.s32.totalorder %s22, 1
      %p82 = scmp.ne.s32.totalorder %s77, %s79
      %p83 = scmp.eq.s32.totalorder %s22, 0
      %p84 = por %p82, %p83
      %p85 = scmp.ne.s32.totalorder %s77, %s79
      %p86 = scmp.eq.s32.totalorder %s27, 1
      %p87 = por %p85, %p86
      %p88 = scmp.ne.s32.totalorder %s79, %s80
      %p89 = scmp.eq.s32.totalorder %s27, 0
      %p90 = por %p88, %p89
      %p91 = scmp.ne.s32.totalorder %s79, %s80
      %p92 = scmp.eq.s32.totalorder %s28, 1
      %p93 = por %p91, %p92
      %p95 = scmp.ne.s32.totalorder %s80, %s94
      %p96 = scmp.eq.s32.totalorder %s28, 0
      %p97 = por %p95, %p96
      %s99 = sadd.s32 %s98, 1
      %p102 = scmp.eq.s32.totalorder %s22, 1
      %p103 = scmp.ne.s32.totalorder %s98, %s100
      %p104 = scmp.eq.s32.totalorder %s22, 0
      %p105 = por %p103, %p104
      %p106 = scmp.ne.s32.totalorder %s98, %s100
      %p107 = scmp.eq.s32.totalorder %s27, 1
      %p108 = por %p106, %p107
      %p109 = scmp.ne.s32.totalorder %s100, %s101
      %p110 = scmp.eq.s32.totalorder %s27, 0
      %p111 = por %p109, %p110
      %p112 = scmp.ne.s32.totalorder %s100, %s101
      %p113 = scmp.eq.s32.totalorder %s28, 1
      %p114 = por %p112, %p113
      %p116 = scmp.ne.s32.totalorder %s101, %s115
      %p117 = scmp.eq.s32.totalorder %s28, 0
      %p118 = por %p116, %p117
      %s120 = sadd.s32 %s119, 1
      %p123 = scmp.eq.s32.totalorder %s22, 1
      %p124 = scmp.ne.s32.totalorder %s119, %s121
      %p125 = scmp.eq.s32.totalorder %s22, 0
      %p126 = por %p124, %p125
      %p127 = scmp.ne.s32.totalorder %s119, %s121
      %p128 = scmp.eq.s32.totalorder %s27, 1
      %p129 = por %p127, %p128
      %p130 = scmp.ne.s32.totalorder %s121, %s122
      %p131 = scmp.eq.s32.totalorder %s27, 0
      %p132 = por %p130, %p131
      %p133 = scmp.ne.s32.totalorder %s121, %s122
      %p134 = scmp.eq.s32.totalorder %s28, 1
      %p135 = por %p133, %p134
      %p137 = scmp.ne.s32.totalorder %s122, %s136
      %p138 = scmp.eq.s32.totalorder %s28, 0
      %p139 = por %p137, %p138
      %s141 = sadd.s32 %s140, 1
      %p144 = scmp.eq.s32.totalorder %s22, 1
      %p145 = scmp.ne.s32.totalorder %s140, %s142
      %p146 = scmp.eq.s32.totalorder %s22, 0
      %p147 = por %p145, %p146
      %p148 = scmp.ne.s32.totalorder %s140, %s142
      %p149 = scmp.eq.s32.totalorder %s27, 1
      %p150 = por %p148, %p149
      %p151 = scmp.ne.s32.totalorder %s142, %s143
      %p152 = scmp.eq.s32.totalorder %s27, 0
      %p153 = por %p151, %p152
      %p154 = scmp.ne.s32.totalorder %s142, %s143
      %p155 = scmp.eq.s32.totalorder %s28, 1
      %p156 = por %p154, %p155
      %p158 = scmp.ne.s32.totalorder %s143, %s157
      %p159 = scmp.eq.s32.totalorder %s28, 0
      %p160 = por %p158, %p159
      %s162 = sadd.s32 %s161, 1
      %p165 = scmp.eq.s32.totalorder %s22, 1
      %p166 = scmp.ne.s32.totalorder %s161, %s163
      %p167 = scmp.eq.s32.totalorder %s22, 0
      %p168 = por %p166, %p167
      %p169 = scmp.ne.s32.totalorder %s161, %s163
      %p170 = scmp.eq.s32.totalorder %s27, 1
      %p171 = por %p169, %p170
      %p172 = scmp.ne.s32.totalorder %s163, %s164
      %p173 = scmp.eq.s32.totalorder %s27, 0
      %p174 = por %p172, %p173
      %p175 = scmp.ne.s32.totalorder %s163, %s164
      %p176 = scmp.eq.s32.totalorder %s28, 1
      %p177 = por %p175, %p176
      %p179 = scmp.ne.s32.totalorder %s164, %s178
      %p180 = scmp.eq.s32.totalorder %s28, 0
      %p181 = por %p179, %p180
      %s183 = sadd.s32 %s182, 1
      %p186 = scmp.eq.s32.totalorder %s22, 1
      %p187 = scmp.ne.s32.totalorder %s182, %s184
      %p188 = scmp.eq.s32.totalorder %s22, 0
      %p189 = por %p187, %p188
      %p190 = scmp.ne.s32.totalorder %s182, %s184
      %p191 = scmp.eq.s32.totalorder %s27, 1
      %p192 = por %p190, %p191
      %p193 = scmp.ne.s32.totalorder %s184, %s185
      %p194 = scmp.eq.s32.totalorder %s27, 0
      %p195 = por %p193, %p194
      %p196 = scmp.ne.s32.totalorder %s184, %s185
      %p197 = scmp.eq.s32.totalorder %s28, 1
      %p198 = por %p196, %p197
      %p200 = scmp.ne.s32.totalorder %s185, %s199
      %p201 = scmp.eq.s32.totalorder %s28, 0
      %p202 = por %p200, %p201
      %s204 = sadd.s32 %s203, 1
      %p207 = scmp.eq.s32.totalorder %s22, 1
      %p208 = scmp.ne.s32.totalorder %s203, %s205
      %p209 = scmp.eq.s32.totalorder %s22, 0
      %p210 = por %p208, %p209
      %p211 = scmp.ne.s32.totalorder %s203, %s205
      %p212 = scmp.eq.s32.totalorder %s27, 1
      %p213 = por %p211, %p212
      %p214 = scmp.ne.s32.totalorder %s205, %s206
      %p215 = scmp.eq.s32.totalorder %s27, 0
      %p216 = por %p214, %p215
      %p217 = scmp.ne.s32.totalorder %s205, %s206
      %p218 = scmp.eq.s32.totalorder %s28, 1
      %p219 = por %p217, %p218
      %p221 = scmp.ne.s32.totalorder %s206, %s220
      %p222 = scmp.eq.s32.totalorder %s28, 0
      %p223 = por %p221, %p222
      %s225 = sadd.s32 %s224, 1
      %p228 = scmp.eq.s32.totalorder %s22, 1
      %p229 = scmp.ne.s32.totalorder %s224, %s226
      %p230 = scmp.eq.s32.totalorder %s22, 0
      %p231 = por %p229, %p230
      %p232 = scmp.ne.s32.totalorder %s224, %s226
      %p233 = scmp.eq.s32.totalorder %s27, 1
      %p234 = por %p232, %p233
      %p235 = scmp.ne.s32.totalorder %s226, %s227
      %p236 = scmp.eq.s32.totalorder %s27, 0
      %p237 = por %p235, %p236
      %p238 = scmp.ne.s32.totalorder %s226, %s227
      %p239 = scmp.eq.s32.totalorder %s28, 1
      %p240 = por %p238, %p239
      %p242 = scmp.ne.s32.totalorder %s227, %s241
      %p243 = scmp.eq.s32.totalorder %s28, 0
      %p244 = por %p242, %p243
      %s246 = sadd.s32 %s245, 1
      %p249 = scmp.eq.s32.totalorder %s22, 1
      %p250 = scmp.ne.s32.totalorder %s245, %s247
      %p251 = scmp.eq.s32.totalorder %s22, 0
      %p252 = por %p250, %p251
      %p253 = scmp.ne.s32.totalorder %s245, %s247
      %p254 = scmp.eq.s32.totalorder %s27, 1
      %p255 = por %p253, %p254
      %p256 = scmp.ne.s32.totalorder %s247, %s248
      %p257 = scmp.eq.s32.totalorder %s27, 0
      %p258 = por %p256, %p257
      %p259 = scmp.ne.s32.totalorder %s247, %s248
      %p260 = scmp.eq.s32.totalorder %s28, 1
      %p261 = por %p259, %p260
      %p263 = scmp.ne.s32.totalorder %s248, %s262
      %p264 = scmp.eq.s32.totalorder %s28, 0
      %p265 = por %p263, %p264
      %s267 = sadd.s32 %s266, 1
      %p270 = scmp.eq.s32.totalorder %s22, 1
      %p271 = scmp.ne.s32.totalorder %s266, %s268
      %p272 = scmp.eq.s32.totalorder %s22, 0
      %p273 = por %p271, %p272
      %p274 = scmp.ne.s32.totalorder %s266, %s268
      %p275 = scmp.eq.s32.totalorder %s27, 1
      %p276 = por %p274, %p275
      %p277 = scmp.ne.s32.totalorder %s268, %s269
      %p278 = scmp.eq.s32.totalorder %s27, 0
      %p279 = por %p277, %p278
      %p280 = scmp.ne.s32.totalorder %s268, %s269
      %p281 = scmp.eq.s32.totalorder %s28, 1
      %p282 = por %p280, %p281
      %p284 = scmp.ne.s32.totalorder %s269, %s283
      %p285 = scmp.eq.s32.totalorder %s28, 0
      %p286 = por %p284, %p285
      %s288 = sadd.s32 %s287, 1
      %p291 = scmp.eq.s32.totalorder %s22, 1
      %p292 = scmp.ne.s32.totalorder %s287, %s289
      %p293 = scmp.eq.s32.totalorder %s22, 0
      %p294 = por %p292, %p293
      %p295 = scmp.ne.s32.totalorder %s287, %s289
      %p296 = scmp.eq.s32.totalorder %s27, 1
      %p297 = por %p295, %p296
      %p298 = scmp.ne.s32.totalorder %s289, %s290
      %p299 = scmp.eq.s32.totalorder %s27, 0
      %p300 = por %p298, %p299
      %p301 = scmp.ne.s32.totalorder %s289, %s290
      %p302 = scmp.eq.s32.totalorder %s28, 1
      %p303 = por %p301, %p302
      %p305 = scmp.ne.s32.totalorder %s290, %s304
      %p306 = scmp.eq.s32.totalorder %s28, 0
      %p307 = por %p305, %p306
      %s308 = ssub.s32 %s22, %s29
      %p309 = scmp.eq.s32.totalorder %s308, 0
      %s311 = sadd.s32 %s310, 1
      %s312 = scalar_select %p309, %s310, %s311
      %p315 = pneg %p309
      %p316 = scmp.eq.s32.totalorder %s22, 1
      %p317 = por %p315, %p316
      %p318 = scmp.ne.s32.totalorder %s310, %s313
      %p319 = scmp.eq.s32.totalorder %s22, 0
      %p320 = por %p318, %p319
      %p321 = scmp.ne.s32.totalorder %s310, %s313
      %p322 = scmp.eq.s32.totalorder %s27, 1
      %p323 = por %p321, %p322
      %p324 = scmp.ne.s32.totalorder %s313, %s314
      %p325 = scmp.eq.s32.totalorder %s27, 0
      %p326 = por %p324, %p325
      %p327 = scmp.ne.s32.totalorder %s313, %s314
      %p328 = scmp.eq.s32.totalorder %s28, 1
      %p329 = por %p327, %p328
      %p331 = scmp.ne.s32.totalorder %s314, %s330
      %p332 = scmp.eq.s32.totalorder %s28, 0
      %p333 = por %p331, %p332
      %p334 = scmp.le.s32.totalorder 1, %s22
      %p335 = scmp.lt.s32.totalorder %s22, 3
      %p336 = pnand %p334, %p335
      %p337 = pneg %p336
      // Predicated region
      $region9: #{tpu_custom_call.1} parent=5 // pred_check
        _
      $region10: #{tpu_custom_call.1} parent=5 // pred_check_branch
        %339 = sbr.rel (%p336) target = $region12
      $region11: #{tpu_custom_call.1} parent=5 // pred_region
        %s340 = ssub.s32 %s22, 1
        // Predicated region
        $region13: #{tpu_custom_call.1} parent=11 // pred_check
          %p341 = pneg %p69
        $region14: #{tpu_custom_call.1} parent=11 // pred_check_branch
          %343 = sbr.rel (%p341) target = $region16
        $region15: #{tpu_custom_call.1} parent=11 // pred_region
          _
        $region16: #{tpu_custom_call.1} parent=11 // pred_fallthru
          _
        // Predicated region
        $region17: #{tpu_custom_call.1} parent=11 // pred_check
          %p344 = pneg %p90
        $region18: #{tpu_custom_call.1} parent=11 // pred_check_branch
          %346 = sbr.rel (%p344) target = $region20
        $region19: #{tpu_custom_call.1} parent=11 // pred_region
          _
        $region20: #{tpu_custom_call.1} parent=11 // pred_fallthru
          _
        // Predicated region
        $region21: #{tpu_custom_call.1} parent=11 // pred_check
          %p347 = pneg %p111
        $region22: #{tpu_custom_call.1} parent=11 // pred_check_branch
          %349 = sbr.rel (%p347) target = $region24
        $region23: #{tpu_custom_call.1} parent=11 // pred_region
          _
        $region24: #{tpu_custom_call.1} parent=11 // pred_fallthru
          _
        // Predicated region
        $region25: #{tpu_custom_call.1} parent=11 // pred_check
          %p350 = pneg %p132
        $region26: #{tpu_custom_call.1} parent=11 // pred_check_branch
          %352 = sbr.rel (%p350) target = $region28
        $region27: #{tpu_custom_call.1} parent=11 // pred_region
          _
        $region28: #{tpu_custom_call.1} parent=11 // pred_fallthru
          _
        // Predicated region
        $region29: #{tpu_custom_call.1} parent=11 // pred_check
          %p353 = pneg %p153
        $region30: #{tpu_custom_call.1} parent=11 // pred_check_branch
          %355 = sbr.rel (%p353) target = $region32
        $region31: #{tpu_custom_call.1} parent=11 // pred_region
          _
        $region32: #{tpu_custom_call.1} parent=11 // pred_fallthru
          _
        // Predicated region
        $region33: #{tpu_custom_call.1} parent=11 // pred_check
          %p356 = pneg %p174
        $region34: #{tpu_custom_call.1} parent=11 // pred_check_branch
          %358 = sbr.rel (%p356) target = $region36
        $region35: #{tpu_custom_call.1} parent=11 // pred_region
          _
        $region36: #{tpu_custom_call.1} parent=11 // pred_fallthru
          _
        // Predicated region
        $region37: #{tpu_custom_call.1} parent=11 // pred_check
          %p359 = pneg %p195
        $region38: #{tpu_custom_call.1} parent=11 // pred_check_branch
          %361 = sbr.rel (%p359) target = $region40
        $region39: #{tpu_custom_call.1} parent=11 // pred_region
          _
        $region40: #{tpu_custom_call.1} parent=11 // pred_fallthru
          _
        // Predicated region
        $region41: #{tpu_custom_call.1} parent=11 // pred_check
          %p362 = pneg %p216
        $region42: #{tpu_custom_call.1} parent=11 // pred_check_branch
          %364 = sbr.rel (%p362) target = $region44
        $region43: #{tpu_custom_call.1} parent=11 // pred_region
          _
        $region44: #{tpu_custom_call.1} parent=11 // pred_fallthru
          _
        // Predicated region
        $region45: #{tpu_custom_call.1} parent=11 // pred_check
          %p365 = pneg %p237
        $region46: #{tpu_custom_call.1} parent=11 // pred_check_branch
          %367 = sbr.rel (%p365) target = $region48
        $region47: #{tpu_custom_call.1} parent=11 // pred_region
          _
        $region48: #{tpu_custom_call.1} parent=11 // pred_fallthru
          _
        // Predicated region
        $region49: #{tpu_custom_call.1} parent=11 // pred_check
          %p368 = pneg %p258
        $region50: #{tpu_custom_call.1} parent=11 // pred_check_branch
          %370 = sbr.rel (%p368) target = $region52
        $region51: #{tpu_custom_call.1} parent=11 // pred_region
          _
        $region52: #{tpu_custom_call.1} parent=11 // pred_fallthru
          _
        // Predicated region
        $region53: #{tpu_custom_call.1} parent=11 // pred_check
          %p371 = pneg %p279
        $region54: #{tpu_custom_call.1} parent=11 // pred_check_branch
          %373 = sbr.rel (%p371) target = $region56
        $region55: #{tpu_custom_call.1} parent=11 // pred_region
          _
        $region56: #{tpu_custom_call.1} parent=11 // pred_fallthru
          _
        // Predicated region
        $region57: #{tpu_custom_call.1} parent=11 // pred_check
          %p374 = pneg %p300
        $region58: #{tpu_custom_call.1} parent=11 // pred_check_branch
          %376 = sbr.rel (%p374) target = $region60
        $region59: #{tpu_custom_call.1} parent=11 // pred_region
          _
        $region60: #{tpu_custom_call.1} parent=11 // pred_fallthru
          _
      $region12: #{tpu_custom_call.1} parent=5 // pred_fallthru
        _
      %p377 = scmp.lt.s32.totalorder %s22, 2
      // Predicated region
      $region61: #{tpu_custom_call.1} parent=5 // pred_check
        %p378 = pneg %p377
      $region62: #{tpu_custom_call.1} parent=5 // pred_check_branch
        %380 = sbr.rel (%p378) target = $region64
      $region63: #{tpu_custom_call.1} parent=5 // pred_region
        // Predicated region
        $region65: #{tpu_custom_call.1} parent=63 // pred_check
          %p381 = pneg %p42
        $region66: #{tpu_custom_call.1} parent=63 // pred_check_branch
          %383 = sbr.rel (%p381) target = $region68
        $region67: #{tpu_custom_call.1} parent=63 // pred_region
          %p384 = scmp.lt.s32.totalorder %s22, 1
          %s385 = scalar_select %p384, %s22, 1
          %s386 = smul.addr %s385, 8
          %s387 = scalar_lea.vmem %s0, %s386
        $region68: #{tpu_custom_call.1} parent=63 // pred_fallthru
          _
      $region64: #{tpu_custom_call.1} parent=5 // pred_fallthru
        _
      %p388 = scmp.le.s32.totalorder 1, %s22
      %p389 = scmp.lt.s32.totalorder %s22, 3
      %p390 = pnand %p388, %p389
      %p391 = pneg %p390
      // Predicated region
      $region69: #{tpu_custom_call.1} parent=5 // pred_check
        _
      $region70: #{tpu_custom_call.1} parent=5 // pred_check_branch
        %393 = sbr.rel (%p390) target = $region72
      $region71: #{tpu_custom_call.1} parent=5 // pred_region
        %s394 = ssub.s32 %s22, 1
        %p395 = scmp.lt.s32.totalorder %s27, 1
        %s396 = scalar_select %p395, %s27, 1
        %s397 = smul.addr %s396, 8
        %s398 = scalar_lea.vmem %s0, %s397
        %p399 = pneg %p48
        %p400 = pneg %p45
        %p401 = pneg %p69
        %p402 = pneg %p66
        %p403 = pneg %p90
        %p404 = pneg %p87
        %p405 = pneg %p111
        %p406 = pneg %p108
        %p407 = pneg %p132
        %p408 = pneg %p129
        %p409 = pneg %p153
        %p410 = pneg %p150
        %p411 = pneg %p174
        %p412 = pneg %p171
        %p413 = pneg %p195
        %p414 = pneg %p192
        %p415 = pneg %p216
        %p416 = pneg %p213
        %p417 = pneg %p237
        %p418 = pneg %p234
        %p419 = pneg %p258
        %p420 = pneg %p255
        %p421 = pneg %p279
        %p422 = pneg %p276
        %p423 = pneg %p300
        %p424 = pneg %p297
        %p425 = pneg %p326
        %p426 = pneg %p323
        %s427 = sand.u32 %s313, 1
        %s428 = scalar_lea.sflag [#allocation5], %s427
        %s429 = sand.u32 %s313, 1
        %s430 = smul.addr %s429, 8
        %s431 = scalar_lea.vmem [#allocation4], %s430
        %p432 = scmp.lt.s32.totalorder %s27, 1
        %s433 = scalar_select %p432, %s27, 1
        %s434 = smul.addr %s433, 8
        %s435 = scalar_lea.vmem %s0, %s434
        %v437 = vld [vmem:[%s435] sm:$0xff]
        %v438 = vld [vmem:[%s1] sm:$0x1]
        %v439 = vld [vmem:[%s2] sm:$0x1]
        %vm440 = vcmask 261120
        %v441 = vsel %vm440, %v437, 0.0
        %442 = vadd.xlane.f32.xlu0 %v441
        %v443 = vpop.xlane.xlu0 %442
        %v444 = vrcp.pop 32.0
        %v445 = vmul.f32 %v443, %v444
        %v446 = vsub.f32 %v437, %v445
        %v447 = vmul.f32 %v446, %v446
        %v448 = vsel %vm440, %v447, 0.0
        %449 = vadd.xlane.f32.xlu0 %v448
        %v450 = vpop.xlane.xlu0 %449
        %v451 = vmul.f32 %v450, %v444
        %v452 = vadd.f32 %v451, 1e-05
        %v453 = vrsqrt.pop %v452
        %v454 = vmul.f32 %v446, %v453
        %v456 = vlaneseq
        %v457 = vshrl.u32 %v456, 7
        %v458 = vsub.s32 0, %v457
        %v459 = vrot.slane %v438, %v458
        %v461 = vmul.f32 %v454, %v459
        %v463 = vlaneseq
        %v464 = vshrl.u32 %v463, 7
        %v465 = vsub.s32 0, %v464
        %v466 = vrot.slane %v439, %v465
        %v468 = vadd.f32 %v461, %v466
        %v469 = vpack.c.bf16 %v468, %v468
        %v470 = vld [vmem:[%s3] sm:$0xf]
        %v471 = vld [vmem:[%s3 + $0x4] sm:$0xf]
        %v472 = vld [vmem:[%s3 + $0x8] sm:$0xf]
        %v473 = vld [vmem:[%s3 + $0xc] sm:$0xf]
        %v474 = vld [vmem:[%s4] sm:$0x1]
        %v476 = vlaneseq
        %v477 = vshrl.u32 %v476, 7
        %v478 = vsub.s32 0, %v477
        %v479 = vrot.slane %v474, %v478
        %v485 = vunpack.c.l.b16 %v470
        %v486 = vunpack.c.l.b16 %v471
        %v487 = vunpack.c.l.b16 %v472
        %v488 = vunpack.c.l.b16 %v473
        %v489 = vpack.c.b16 %v486, %v485
        %v490 = vpack.c.b16 %v488, %v487
        %v494 = vsel %vm440, %v469, 0
        %496 = vmatprep.subr.bf16.mxu0 0
        %497 = vmatpush1.bf16.msra.mxu0 0
        %498 = vmatprep.subr.bf16.mxu0 0
        %499 = vmatpush1.bf16.msra.mxu0 0
        %500 = vmatprep.subr.bf16.mxu0 0
        %501 = vmatpush1.bf16.msra.mxu0 0
        %502 = vmatprep.subr.bf16.mxu0 0
        %503 = vmatpush1.bf16.msra.mxu0 0
        %504 = vmatprep.subr.bf16.mxu0 0
        %505 = vmatpush1.bf16.msra.mxu0 0
        %506 = vmatprep.subr.bf16.mxu0 0
        %507 = vmatpush1.bf16.msra.mxu0 0
        %508 = vmatprep.subr.bf16.mxu0 0
        %509 = vmatpush1.bf16.msra.mxu0 %v490
        %510 = vmatprep.subr.bf16.mxu0 0
        %511 = vmatpush1.bf16.msra.mxu0 %v489
        %512 = vmatprep.subr.bf16.mxu0 0
        %513 = vmatpush2.bf16.msra.mxu0 0
        %514 = vmatprep.subr.bf16.mxu0 0
        %515 = vmatpush2.bf16.msra.mxu0 0
        %516 = vmatprep.subr.bf16.mxu0 0
        %517 = vmatpush2.bf16.msra.mxu0 0
        %518 = vmatprep.subr.bf16.mxu0 0
        %519 = vmatpush2.bf16.msra.mxu0 0
        %520 = vmatprep.subr.bf16.mxu0 0
        %521 = vmatpush2.bf16.msra.mxu0 0
        %522 = vmatprep.subr.bf16.mxu0 0
        %523 = vmatpush2.bf16.msra.mxu0 0
        %524 = vmatprep.subr.bf16.mxu0 0
        %525 = vmatpush2.bf16.msra.mxu0 0
        %526 = vmatprep.subr.bf16.mxu0 0
        %527 = vmatpush2.bf16.msra.mxu0 0
        %528 = vmatprep.mubr.bf16.mxu0 0
        %529 = vmatmul.mubr.bf16.gmra.mxu0 %v494
        %v530 = vpop.f32.mrf.mxu0
        %v531 = vadd.f32 %v479, %v530
        %v532 = vpop.f32.mrf.mxu0
        %v533 = vpop.f32.mrf.mxu0
        %v534 = vpop.f32.mrf.mxu0
        %535 = vdwg.mxu0
        %v536 = vmul.f32 %v531, 0.35355338
        %v537 = vpack.c.bf16 %v536, %v536
        %vm538 = vcmask 257024
        %539 = vst.msk [vmem:[#allocation2] sm:$0xf] %vm538, %v537
        %v540 = vpack.c.bf16 %v531, %v531
        %vm541 = vcmask 781568
        %542 = vst.msk [vmem:[#allocation2] sm:$0xf] %vm541, %v540
        %v543 = vld [vmem:[#allocation2] sm:$0xf]
        %v545 = vunpack.c.l.b16 %v543
        %v546 = vpack.c.b16 %v545, %v545
        %547 = vrot.lane.b32.xlu0 %v546, 96
        %v548 = vpop.permute.xlu0 %547
        %vm549 = vcmask 64512
        %v551 = vsel %vm549, %v543, 0
        %v554 = vsel %vm549, %v548, 0
        %556 = vmatprep.subr.bf16.mxu0 0
        %557 = vmatpush1.bf16.xpose.msra.mxu0 0
        %558 = vmatprep.subr.bf16.mxu0 0
        %559 = vmatpush1.bf16.xpose.msra.mxu0 0
        %560 = vmatprep.subr.bf16.mxu0 0
        %561 = vmatpush1.bf16.xpose.msra.mxu0 0
        %562 = vmatprep.subr.bf16.mxu0 0
        %563 = vmatpush1.bf16.xpose.msra.mxu0 0
        %564 = vmatprep.subr.bf16.mxu0 0
        %565 = vmatpush1.bf16.xpose.msra.mxu0 0
        %566 = vmatprep.subr.bf16.mxu0 0
        %567 = vmatpush1.bf16.xpose.msra.mxu0 0
        %568 = vmatprep.subr.bf16.mxu0 0
        %569 = vmatpush1.bf16.xpose.msra.mxu0 0
        %570 = vmatprep.subr.bf16.mxu0 0
        %571 = vmatpush1.bf16.xpose.msra.mxu0 %v554
        %572 = vmatprep.subr.bf16.mxu0 0
        %573 = vmatpush2.bf16.xpose.msra.mxu0 0
        %574 = vmatprep.subr.bf16.mxu0 0
        %575 = vmatpush2.bf16.xpose.msra.mxu0 0
        %576 = vmatprep.subr.bf16.mxu0 0
        %577 = vmatpush2.bf16.xpose.msra.mxu0 0
        %578 = vmatprep.subr.bf16.mxu0 0
        %579 = vmatpush2.bf16.xpose.msra.mxu0 0
        %580 = vmatprep.subr.bf16.mxu0 0
        %581 = vmatpush2.bf16.xpose.msra.mxu0 0
        %582 = vmatprep.subr.bf16.mxu0 0
        %583 = vmatpush2.bf16.xpose.msra.mxu0 0
        %584 = vmatprep.subr.bf16.mxu0 0
        %585 = vmatpush2.bf16.xpose.msra.mxu0 0
        %586 = vmatprep.subr.bf16.mxu0 0
        %587 = vmatpush2.bf16.xpose.msra.mxu0 0
        %588 = vmatprep.mubr.bf16.mxu0 0
        %589 = vmatmul.mubr.bf16.gmra.mxu0 %v551
        %v590 = vpop.f32.mrf.mxu0
        %v591 = vadd.f32 0.0, %v590
        %v592 = vpop.f32.mrf.mxu0
        %v593 = vpop.f32.mrf.mxu0
        %v594 = vpop.f32.mrf.mxu0
        %595 = vdwg.mxu0
        %v596 = vsel %vm549, %v591, -inf
        %597 = vmax.xlane.f32.xlu0 %v596
        %v598 = vpop.xlane.xlu0 %597
        %v599 = vsub.f32 %v591, %v598
        %v600 = vmul.f32 %v599, 1.442695
        %v601 = vpow.pop %v600
        %v602 = vsel %vm549, %v601, 0.0
        %603 = vadd.xlane.f32.xlu0 %v602
        %v604 = vpop.xlane.xlu0 %603
        %v605 = vrcp.pop %v604
        %v606 = vmul.f32 %v601, %v605
        %v607 = vpack.c.bf16 %v606, %v606
        %608 = vrot.lane.b32.xlu0 %v546, 64
        %v609 = vpop.permute.xlu0 %608
        %v611 = vsel %vm549, %v607, 0
        %vm613 = vcmask 1043456
        %v615 = vsel %vm613, %v609, 0
        %617 = vmatprep.subr.bf16.mxu0 0
        %618 = vmatpush1.bf16.msra.mxu0 0
        %619 = vmatprep.subr.bf16.mxu0 0
        %620 = vmatpush1.bf16.msra.mxu0 0
        %621 = vmatprep.subr.bf16.mxu0 0
        %622 = vmatpush1.bf16.msra.mxu0 0
        %623 = vmatprep.subr.bf16.mxu0 0
        %624 = vmatpush1.bf16.msra.mxu0 0
        %625 = vmatprep.subr.bf16.mxu0 0
        %626 = vmatpush1.bf16.msra.mxu0 0
        %627 = vmatprep.subr.bf16.mxu0 0
        %628 = vmatpush1.bf16.msra.mxu0 0
        %629 = vmatprep.subr.bf16.mxu0 0
        %630 = vmatpush1.bf16.msra.mxu0 0
        %631 = vmatprep.subr.bf16.mxu0 0
        %632 = vmatpush1.bf16.msra.mxu0 %v615
        %633 = vmatprep.subr.bf16.mxu0 0
        %634 = vmatpush2.bf16.msra.mxu0 0
        %635 = vmatprep.subr.bf16.mxu0 0
        %636 = vmatpush2.bf16.msra.mxu0 0
        %637 = vmatprep.subr.bf16.mxu0 0
        %638 = vmatpush2.bf16.msra.mxu0 0
        %639 = vmatprep.subr.bf16.mxu0 0
        %640 = vmatpush2.bf16.msra.mxu0 0
        %641 = vmatprep.subr.bf16.mxu0 0
        %642 = vmatpush2.bf16.msra.mxu0 0
        %643 = vmatprep.subr.bf16.mxu0 0
        %644 = vmatpush2.bf16.msra.mxu0 0
        %645 = vmatprep.subr.bf16.mxu0 0
        %646 = vmatpush2.bf16.msra.mxu0 0
        %647 = vmatprep.subr.bf16.mxu0 0
        %648 = vmatpush2.bf16.msra.mxu0 0
        %649 = vmatprep.mubr.bf16.mxu0 0
        %650 = vmatmul.mubr.bf16.gmra.mxu0 %v611
        %v651 = vpop.f32.mrf.mxu0
        %v652 = vadd.f32 0.0, %v651
        %v653 = vpop.f32.mrf.mxu0
        %v654 = vpop.f32.mrf.mxu0
        %v655 = vpop.f32.mrf.mxu0
        %656 = vdwg.mxu0
        %v657 = vpack.c.bf16 %v652, %v652
        %vm658 = vcmask 60416
        %659 = vst.msk [vmem:[#allocation3] sm:$0xf] %vm658, %v657
        %v660 = vld [vmem:[#allocation2] sm:$0xf]
        %v662 = vunpack.c.l.b16 %v660
        %v663 = vpack.c.b16 %v662, %v662
        %664 = vrot.lane.b32.xlu0 %v663, 120
        %v665 = vpop.permute.xlu0 %664
        %666 = vrot.lane.b32.xlu0 %v663, 88
        %v667 = vpop.permute.xlu0 %666
        %v669 = vsel %vm549, %v665, 0
        %v672 = vsel %vm549, %v667, 0
        %674 = vmatprep.subr.bf16.mxu0 0
        %675 = vmatpush1.bf16.xpose.msra.mxu0 0
        %676 = vmatprep.subr.bf16.mxu0 0
        %677 = vmatpush1.bf16.xpose.msra.mxu0 0
        %678 = vmatprep.subr.bf16.mxu0 0
        %679 = vmatpush1.bf16.xpose.msra.mxu0 0
        %680 = vmatprep.subr.bf16.mxu0 0
        %681 = vmatpush1.bf16.xpose.msra.mxu0 0
        %682 = vmatprep.subr.bf16.mxu0 0
        %683 = vmatpush1.bf16.xpose.msra.mxu0 0
        %684 = vmatprep.subr.bf16.mxu0 0
        %685 = vmatpush1.bf16.xpose.msra.mxu0 0
        %686 = vmatprep.subr.bf16.mxu0 0
        %687 = vmatpush1.bf16.xpose.msra.mxu0 0
        %688 = vmatprep.subr.bf16.mxu0 0
        %689 = vmatpush1.bf16.xpose.msra.mxu0 %v672
        %690 = vmatprep.subr.bf16.mxu0 0
        %691 = vmatpush2.bf16.xpose.msra.mxu0 0
        %692 = vmatprep.subr.bf16.mxu0 0
        %693 = vmatpush2.bf16.xpose.msra.mxu0 0
        %694 = vmatprep.subr.bf16.mxu0 0
        %695 = vmatpush2.bf16.xpose.msra.mxu0 0
        %696 = vmatprep.subr.bf16.mxu0 0
        %697 = vmatpush2.bf16.xpose.msra.mxu0 0
        %698 = vmatprep.subr.bf16.mxu0 0
        %699 = vmatpush2.bf16.xpose.msra.mxu0 0
        %700 = vmatprep.subr.bf16.mxu0 0
        %701 = vmatpush2.bf16.xpose.msra.mxu0 0
        %702 = vmatprep.subr.bf16.mxu0 0
        %703 = vmatpush2.bf16.xpose.msra.mxu0 0
        %704 = vmatprep.subr.bf16.mxu0 0
        %705 = vmatpush2.bf16.xpose.msra.mxu0 0
        %706 = vmatprep.mubr.bf16.mxu0 0
        %707 = vmatmul.mubr.bf16.gmra.mxu0 %v669
        %v708 = vpop.f32.mrf.mxu0
        %v709 = vadd.f32 0.0, %v708
        %v710 = vpop.f32.mrf.mxu0
        %v711 = vpop.f32.mrf.mxu0
        %v712 = vpop.f32.mrf.mxu0
        %713 = vdwg.mxu0
        %v714 = vsel %vm549, %v709, -inf
        %715 = vmax.xlane.f32.xlu0 %v714
        %v716 = vpop.xlane.xlu0 %715
        %v717 = vsub.f32 %v709, %v716
        %v718 = vmul.f32 %v717, 1.442695
        %v719 = vpow.pop %v718
        %v720 = vsel %vm549, %v719, 0.0
        %721 = vadd.xlane.f32.xlu0 %v720
        %v722 = vpop.xlane.xlu0 %721
        %v723 = vrcp.pop %v722
        %v724 = vmul.f32 %v719, %v723
        %v725 = vpack.c.bf16 %v724, %v724
        %726 = vrot.lane.b32.xlu0 %v663, 56
        %v727 = vpop.permute.xlu0 %726
        %v729 = vsel %vm549, %v725, 0
        %v732 = vsel %vm613, %v727, 0
        %734 = vmatprep.subr.bf16.mxu0 0
        %735 = vmatpush1.bf16.msra.mxu0 0
        %736 = vmatprep.subr.bf16.mxu0 0
        %737 = vmatpush1.bf16.msra.mxu0 0
        %738 = vmatprep.subr.bf16.mxu0 0
        %739 = vmatpush1.bf16.msra.mxu0 0
        %740 = vmatprep.subr.bf16.mxu0 0
        %741 = vmatpush1.bf16.msra.mxu0 0
        %742 = vmatprep.subr.bf16.mxu0 0
        %743 = vmatpush1.bf16.msra.mxu0 0
        %744 = vmatprep.subr.bf16.mxu0 0
        %745 = vmatpush1.bf16.msra.mxu0 0
        %746 = vmatprep.subr.bf16.mxu0 0
        %747 = vmatpush1.bf16.msra.mxu0 0
        %748 = vmatprep.subr.bf16.mxu0 0
        %749 = vmatpush1.bf16.msra.mxu0 %v732
        %750 = vmatprep.subr.bf16.mxu0 0
        %751 = vmatpush2.bf16.msra.mxu0 0
        %752 = vmatprep.subr.bf16.mxu0 0
        %753 = vmatpush2.bf16.msra.mxu0 0
        %754 = vmatprep.subr.bf16.mxu0 0
        %755 = vmatpush2.bf16.msra.mxu0 0
        %756 = vmatprep.subr.bf16.mxu0 0
        %757 = vmatpush2.bf16.msra.mxu0 0
        %758 = vmatprep.subr.bf16.mxu0 0
        %759 = vmatpush2.bf16.msra.mxu0 0
        %760 = vmatprep.subr.bf16.mxu0 0
        %761 = vmatpush2.bf16.msra.mxu0 0
        %762 = vmatprep.subr.bf16.mxu0 0
        %763 = vmatpush2.bf16.msra.mxu0 0
        %764 = vmatprep.subr.bf16.mxu0 0
        %765 = vmatpush2.bf16.msra.mxu0 0
        %766 = vmatprep.mubr.bf16.mxu0 0
        %767 = vmatmul.mubr.bf16.gmra.mxu0 %v729
        %v768 = vpop.f32.mrf.mxu0
        %v769 = vadd.f32 0.0, %v768
        %v770 = vpop.f32.mrf.mxu0
        %v771 = vpop.f32.mrf.mxu0
        %v772 = vpop.f32.mrf.mxu0
        %773 = vdwg.mxu0
        %v774 = vpack.c.bf16 %v769, %v769
        %v776 = vunpack.c.l.b16 %v774
        %v777 = vpack.c.b16 %v776, %v776
        %778 = vrot.lane.b32.xlu0 %v777, 8
        %v779 = vpop.permute.xlu0 %778
        %vm781 = vcmask 126016
        %782 = vst.msk [vmem:[#allocation3] sm:$0xf] %vm781, %v779
        %v783 = vld [vmem:[#allocation2] sm:$0xf]
        %v785 = vunpack.c.l.b16 %v783
        %v786 = vpack.c.b16 %v785, %v785
        %787 = vrot.lane.b32.xlu0 %v786, 112
        %v788 = vpop.permute.xlu0 %787
        %789 = vrot.lane.b32.xlu0 %v786, 80
        %v790 = vpop.permute.xlu0 %789
        %v792 = vsel %vm549, %v788, 0
        %v795 = vsel %vm549, %v790, 0
        %797 = vmatprep.subr.bf16.mxu0 0
        %798 = vmatpush1.bf16.xpose.msra.mxu0 0
        %799 = vmatprep.subr.bf16.mxu0 0
        %800 = vmatpush1.bf16.xpose.msra.mxu0 0
        %801 = vmatprep.subr.bf16.mxu0 0
        %802 = vmatpush1.bf16.xpose.msra.mxu0 0
        %803 = vmatprep.subr.bf16.mxu0 0
        %804 = vmatpush1.bf16.xpose.msra.mxu0 0
        %805 = vmatprep.subr.bf16.mxu0 0
        %806 = vmatpush1.bf16.xpose.msra.mxu0 0
        %807 = vmatprep.subr.bf16.mxu0 0
        %808 = vmatpush1.bf16.xpose.msra.mxu0 0
        %809 = vmatprep.subr.bf16.mxu0 0
        %810 = vmatpush1.bf16.xpose.msra.mxu0 0
        %811 = vmatprep.subr.bf16.mxu0 0
        %812 = vmatpush1.bf16.xpose.msra.mxu0 %v795
        %813 = vmatprep.subr.bf16.mxu0 0
        %814 = vmatpush2.bf16.xpose.msra.mxu0 0
        %815 = vmatprep.subr.bf16.mxu0 0
        %816 = vmatpush2.bf16.xpose.msra.mxu0 0
        %817 = vmatprep.subr.bf16.mxu0 0
        %818 = vmatpush2.bf16.xpose.msra.mxu0 0
        %819 = vmatprep.subr.bf16.mxu0 0
        %820 = vmatpush2.bf16.xpose.msra.mxu0 0
        %821 = vmatprep.subr.bf16.mxu0 0
        %822 = vmatpush2.bf16.xpose.msra.mxu0 0
        %823 = vmatprep.subr.bf16.mxu0 0
        %824 = vmatpush2.bf16.xpose.msra.mxu0 0
        %825 = vmatprep.subr.bf16.mxu0 0
        %826 = vmatpush2.bf16.xpose.msra.mxu0 0
        %827 = vmatprep.subr.bf16.mxu0 0
        %828 = vmatpush2.bf16.xpose.msra.mxu0 0
        %829 = vmatprep.mubr.bf16.mxu0 0
        %830 = vmatmul.mubr.bf16.gmra.mxu0 %v792
        %v831 = vpop.f32.mrf.mxu0
        %v832 = vadd.f32 0.0, %v831
        %v833 = vpop.f32.mrf.mxu0
        %v834 = vpop.f32.mrf.mxu0
        %v835 = vpop.f32.mrf.mxu0
        %836 = vdwg.mxu0
        %v837 = vsel %vm549, %v832, -inf
        %838 = vmax.xlane.f32.xlu0 %v837
        %v839 = vpop.xlane.xlu0 %838
        %v840 = vsub.f32 %v832, %v839
        %v841 = vmul.f32 %v840, 1.442695
        %v842 = vpow.pop %v841
        %v843 = vsel %vm549, %v842, 0.0
        %844 = vadd.xlane.f32.xlu0 %v843
        %v845 = vpop.xlane.xlu0 %844
        %v846 = vrcp.pop %v845
        %v847 = vmul.f32 %v842, %v846
        %v848 = vpack.c.bf16 %v847, %v847
        %849 = vrot.lane.b32.xlu0 %v786, 48
        %v850 = vpop.permute.xlu0 %849
        %v852 = vsel %vm549, %v848, 0
        %v855 = vsel %vm613, %v850, 0
        %857 = vmatprep.subr.bf16.mxu0 0
        %858 = vmatpush1.bf16.msra.mxu0 0
        %859 = vmatprep.subr.bf16.mxu0 0
        %860 = vmatpush1.bf16.msra.mxu0 0
        %861 = vmatprep.subr.bf16.mxu0 0
        %862 = vmatpush1.bf16.msra.mxu0 0
        %863 = vmatprep.subr.bf16.mxu0 0
        %864 = vmatpush1.bf16.msra.mxu0 0
        %865 = vmatprep.subr.bf16.mxu0 0
        %866 = vmatpush1.bf16.msra.mxu0 0
        %867 = vmatprep.subr.bf16.mxu0 0
        %868 = vmatpush1.bf16.msra.mxu0 0
        %869 = vmatprep.subr.bf16.mxu0 0
        %870 = vmatpush1.bf16.msra.mxu0 0
        %871 = vmatprep.subr.bf16.mxu0 0
        %872 = vmatpush1.bf16.msra.mxu0 %v855
        %873 = vmatprep.subr.bf16.mxu0 0
        %874 = vmatpush2.bf16.msra.mxu0 0
        %875 = vmatprep.subr.bf16.mxu0 0
        %876 = vmatpush2.bf16.msra.mxu0 0
        %877 = vmatprep.subr.bf16.mxu0 0
        %878 = vmatpush2.bf16.msra.mxu0 0
        %879 = vmatprep.subr.bf16.mxu0 0
        %880 = vmatpush2.bf16.msra.mxu0 0
        %881 = vmatprep.subr.bf16.mxu0 0
        %882 = vmatpush2.bf16.msra.mxu0 0
        %883 = vmatprep.subr.bf16.mxu0 0
        %884 = vmatpush2.bf16.msra.mxu0 0
        %885 = vmatprep.subr.bf16.mxu0 0
        %886 = vmatpush2.bf16.msra.mxu0 0
        %887 = vmatprep.subr.bf16.mxu0 0
        %888 = vmatpush2.bf16.msra.mxu0 0
        %889 = vmatprep.mubr.bf16.mxu0 0
        %890 = vmatmul.mubr.bf16.gmra.mxu0 %v852
        %v891 = vpop.f32.mrf.mxu0
        %v892 = vadd.f32 0.0, %v891
        %v893 = vpop.f32.mrf.mxu0
        %v894 = vpop.f32.mrf.mxu0
        %v895 = vpop.f32.mrf.mxu0
        %896 = vdwg.mxu0
        %v897 = vpack.c.bf16 %v892, %v892
        %v899 = vunpack.c.l.b16 %v897
        %v900 = vpack.c.b16 %v899, %v899
        %901 = vrot.lane.b32.xlu0 %v900, 16
        %v902 = vpop.permute.xlu0 %901
        %vm904 = vcmask 191616
        %905 = vst.msk [vmem:[#allocation3] sm:$0xf] %vm904, %v902
        %v906 = vld [vmem:[#allocation2] sm:$0xf]
        %v908 = vunpack.c.l.b16 %v906
        %v909 = vpack.c.b16 %v908, %v908
        %910 = vrot.lane.b32.xlu0 %v909, 104
        %v911 = vpop.permute.xlu0 %910
        %912 = vrot.lane.b32.xlu0 %v909, 72
        %v913 = vpop.permute.xlu0 %912
        %v915 = vsel %vm549, %v911, 0
        %v918 = vsel %vm549, %v913, 0
        %920 = vmatprep.subr.bf16.mxu0 0
        %921 = vmatpush1.bf16.xpose.msra.mxu0 0
        %922 = vmatprep.subr.bf16.mxu0 0
        %923 = vmatpush1.bf16.xpose.msra.mxu0 0
        %924 = vmatprep.subr.bf16.mxu0 0
        %925 = vmatpush1.bf16.xpose.msra.mxu0 0
        %926 = vmatprep.subr.bf16.mxu0 0
        %927 = vmatpush1.bf16.xpose.msra.mxu0 0
        %928 = vmatprep.subr.bf16.mxu0 0
        %929 = vmatpush1.bf16.xpose.msra.mxu0 0
        %930 = vmatprep.subr.bf16.mxu0 0
        %931 = vmatpush1.bf16.xpose.msra.mxu0 0
        %932 = vmatprep.subr.bf16.mxu0 0
        %933 = vmatpush1.bf16.xpose.msra.mxu0 0
        %934 = vmatprep.subr.bf16.mxu0 0
        %935 = vmatpush1.bf16.xpose.msra.mxu0 %v918
        %936 = vmatprep.subr.bf16.mxu0 0
        %937 = vmatpush2.bf16.xpose.msra.mxu0 0
        %938 = vmatprep.subr.bf16.mxu0 0
        %939 = vmatpush2.bf16.xpose.msra.mxu0 0
        %940 = vmatprep.subr.bf16.mxu0 0
        %941 = vmatpush2.bf16.xpose.msra.mxu0 0
        %942 = vmatprep.subr.bf16.mxu0 0
        %943 = vmatpush2.bf16.xpose.msra.mxu0 0
        %944 = vmatprep.subr.bf16.mxu0 0
        %945 = vmatpush2.bf16.xpose.msra.mxu0 0
        %946 = vmatprep.subr.bf16.mxu0 0
        %947 = vmatpush2.bf16.xpose.msra.mxu0 0
        %948 = vmatprep.subr.bf16.mxu0 0
        %949 = vmatpush2.bf16.xpose.msra.mxu0 0
        %950 = vmatprep.subr.bf16.mxu0 0
        %951 = vmatpush2.bf16.xpose.msra.mxu0 0
        %952 = vmatprep.mubr.bf16.mxu0 0
        %953 = vmatmul.mubr.bf16.gmra.mxu0 %v915
        %v954 = vpop.f32.mrf.mxu0
        %v955 = vadd.f32 0.0, %v954
        %v956 = vpop.f32.mrf.mxu0
        %v957 = vpop.f32.mrf.mxu0
        %v958 = vpop.f32.mrf.mxu0
        %959 = vdwg.mxu0
        %v960 = vsel %vm549, %v955, -inf
        %961 = vmax.xlane.f32.xlu0 %v960
        %v962 = vpop.xlane.xlu0 %961
        %v963 = vsub.f32 %v955, %v962
        %v964 = vmul.f32 %v963, 1.442695
        %v965 = vpow.pop %v964
        %v966 = vsel %vm549, %v965, 0.0
        %967 = vadd.xlane.f32.xlu0 %v966
        %v968 = vpop.xlane.xlu0 %967
        %v969 = vrcp.pop %v968
        %v970 = vmul.f32 %v965, %v969
        %v971 = vpack.c.bf16 %v970, %v970
        %972 = vrot.lane.b32.xlu0 %v909, 40
        %v973 = vpop.permute.xlu0 %972
        %v975 = vsel %vm549, %v971, 0
        %v978 = vsel %vm613, %v973, 0
        %980 = vmatprep.subr.bf16.mxu0 0
        %981 = vmatpush1.bf16.msra.mxu0 0
        %982 = vmatprep.subr.bf16.mxu0 0
        %983 = vmatpush1.bf16.msra.mxu0 0
        %984 = vmatprep.subr.bf16.mxu0 0
        %985 = vmatpush1.bf16.msra.mxu0 0
        %986 = vmatprep.subr.bf16.mxu0 0
        %987 = vmatpush1.bf16.msra.mxu0 0
        %988 = vmatprep.subr.bf16.mxu0 0
        %989 = vmatpush1.bf16.msra.mxu0 0
        %990 = vmatprep.subr.bf16.mxu0 0
        %991 = vmatpush1.bf16.msra.mxu0 0
        %992 = vmatprep.subr.bf16.mxu0 0
        %993 = vmatpush1.bf16.msra.mxu0 0
        %994 = vmatprep.subr.bf16.mxu0 0
        %995 = vmatpush1.bf16.msra.mxu0 %v978
        %996 = vmatprep.subr.bf16.mxu0 0
        %997 = vmatpush2.bf16.msra.mxu0 0
        %998 = vmatprep.subr.bf16.mxu0 0
        %999 = vmatpush2.bf16.msra.mxu0 0
        %1000 = vmatprep.subr.bf16.mxu0 0
        %1001 = vmatpush2.bf16.msra.mxu0 0
        %1002 = vmatprep.subr.bf16.mxu0 0
        %1003 = vmatpush2.bf16.msra.mxu0 0
        %1004 = vmatprep.subr.bf16.mxu0 0
        %1005 = vmatpush2.bf16.msra.mxu0 0
        %1006 = vmatprep.subr.bf16.mxu0 0
        %1007 = vmatpush2.bf16.msra.mxu0 0
        %1008 = vmatprep.subr.bf16.mxu0 0
        %1009 = vmatpush2.bf16.msra.mxu0 0
        %1010 = vmatprep.subr.bf16.mxu0 0
        %1011 = vmatpush2.bf16.msra.mxu0 0
        %1012 = vmatprep.mubr.bf16.mxu0 0
        %1013 = vmatmul.mubr.bf16.gmra.mxu0 %v975
        %v1014 = vpop.f32.mrf.mxu0
        %v1015 = vadd.f32 0.0, %v1014
        %v1016 = vpop.f32.mrf.mxu0
        %v1017 = vpop.f32.mrf.mxu0
        %v1018 = vpop.f32.mrf.mxu0
        %1019 = vdwg.mxu0
        %v1020 = vpack.c.bf16 %v1015, %v1015
        %v1022 = vunpack.c.l.b16 %v1020
        %v1023 = vpack.c.b16 %v1022, %v1022
        %1024 = vrot.lane.b32.xlu0 %v1023, 24
        %v1025 = vpop.permute.xlu0 %1024
        %vm1027 = vcmask 257216
        %1028 = vst.msk [vmem:[#allocation3] sm:$0xf] %vm1027, %v1025
        %v1029 = vld [vmem:[#allocation3] sm:$0xf]
        %v1030 = vld [vmem:[%s5] sm:$0xf]
        %v1031 = vld [vmem:[%s5 + $0x4] sm:$0xf]
        %v1032 = vld [vmem:[%s5 + $0x8] sm:$0xf]
        %v1033 = vld [vmem:[%s5 + $0xc] sm:$0xf]
        %v1034 = vld [vmem:[%s6] sm:$0x1]
        %v1036 = vlaneseq
        %v1037 = vshrl.u32 %v1036, 7
        %v1038 = vsub.s32 0, %v1037
        %v1039 = vrot.slane %v1034, %v1038
        %v1045 = vunpack.c.l.b16 %v1030
        %v1046 = vunpack.c.l.b16 %v1031
        %v1047 = vunpack.c.l.b16 %v1032
        %v1048 = vunpack.c.l.b16 %v1033
        %v1049 = vpack.c.b16 %v1046, %v1045
        %v1050 = vpack.c.b16 %v1048, %v1047
        %v1054 = vsel %vm440, %v1029, 0
        %1056 = vmatprep.subr.bf16.mxu0 0
        %1057 = vmatpush1.bf16.msra.mxu0 0
        %1058 = vmatprep.subr.bf16.mxu0 0
        %1059 = vmatpush1.bf16.msra.mxu0 0
        %1060 = vmatprep.subr.bf16.mxu0 0
        %1061 = vmatpush1.bf16.msra.mxu0 0
        %1062 = vmatprep.subr.bf16.mxu0 0
        %1063 = vmatpush1.bf16.msra.mxu0 0
        %1064 = vmatprep.subr.bf16.mxu0 0
        %1065 = vmatpush1.bf16.msra.mxu0 0
        %1066 = vmatprep.subr.bf16.mxu0 0
        %1067 = vmatpush1.bf16.msra.mxu0 0
        %1068 = vmatprep.subr.bf16.mxu0 0
        %1069 = vmatpush1.bf16.msra.mxu0 %v1050
        %1070 = vmatprep.subr.bf16.mxu0 0
        %1071 = vmatpush1.bf16.msra.mxu0 %v1049
        %1072 = vmatprep.subr.bf16.mxu0 0
        %1073 = vmatpush2.bf16.msra.mxu0 0
        %1074 = vmatprep.subr.bf16.mxu0 0
        %1075 = vmatpush2.bf16.msra.mxu0 0
        %1076 = vmatprep.subr.bf16.mxu0 0
        %1077 = vmatpush2.bf16.msra.mxu0 0
        %1078 = vmatprep.subr.bf16.mxu0 0
        %1079 = vmatpush2.bf16.msra.mxu0 0
        %1080 = vmatprep.subr.bf16.mxu0 0
        %1081 = vmatpush2.bf16.msra.mxu0 0
        %1082 = vmatprep.subr.bf16.mxu0 0
        %1083 = vmatpush2.bf16.msra.mxu0 0
        %1084 = vmatprep.subr.bf16.mxu0 0
        %1085 = vmatpush2.bf16.msra.mxu0 0
        %1086 = vmatprep.subr.bf16.mxu0 0
        %1087 = vmatpush2.bf16.msra.mxu0 0
        %1088 = vmatprep.mubr.bf16.mxu0 0
        %1089 = vmatmul.mubr.bf16.gmra.mxu0 %v1054
        %v1090 = vpop.f32.mrf.mxu0
        %v1091 = vadd.f32 %v1039, %v1090
        %v1092 = vpop.f32.mrf.mxu0
        %v1093 = vpop.f32.mrf.mxu0
        %v1094 = vpop.f32.mrf.mxu0
        %1095 = vdwg.mxu0
        %v1096 = vadd.f32 %v437, %v1091
        %v1097 = vld [vmem:[%s7] sm:$0x1]
        %v1098 = vld [vmem:[%s8] sm:$0x1]
        %v1099 = vsel %vm440, %v1096, 0.0
        %1100 = vadd.xlane.f32.xlu0 %v1099
        %v1101 = vpop.xlane.xlu0 %1100
        %v1102 = vmul.f32 %v1101, %v444
        %v1103 = vsub.f32 %v1096, %v1102
        %v1104 = vmul.f32 %v1103, %v1103
        %v1105 = vsel %vm440, %v1104, 0.0
        %1106 = vadd.xlane.f32.xlu0 %v1105
        %v1107 = vpop.xlane.xlu0 %1106
        %v1108 = vmul.f32 %v1107, %v444
        %v1109 = vadd.f32 %v1108, 1e-05
        %v1110 = vrsqrt.pop %v1109
        %v1111 = vmul.f32 %v1103, %v1110
        %v1113 = vlaneseq
        %v1114 = vshrl.u32 %v1113, 7
        %v1115 = vsub.s32 0, %v1114
        %v1116 = vrot.slane %v1097, %v1115
        %v1118 = vmul.f32 %v1111, %v1116
        %v1120 = vlaneseq
        %v1121 = vshrl.u32 %v1120, 7
        %v1122 = vsub.s32 0, %v1121
        %v1123 = vrot.slane %v1098, %v1122
        %v1125 = vadd.f32 %v1118, %v1123
        %v1126 = vpack.c.bf16 %v1125, %v1125
        %v1127 = vld [vmem:[%s10] sm:$0x1]
        %v1128 = vld [vmem:[%s12] sm:$0x1]
        %v1129 = vld [vmem:[%s9] sm:$0xf]
        %v1130 = vld [vmem:[%s9 + $0x4] sm:$0xf]
        %v1131 = vld [vmem:[%s9 + $0x8] sm:$0xf]
        %v1132 = vld [vmem:[%s9 + $0xc] sm:$0xf]
        %v1134 = vlaneseq
        %v1135 = vshrl.u32 %v1134, 7
        %v1136 = vsub.s32 0, %v1135
        %v1137 = vrot.slane %v1127, %v1136
        %v1143 = vunpack.c.l.b16 %v1129
        %v1144 = vunpack.c.l.b16 %v1130
        %v1145 = vunpack.c.l.b16 %v1131
        %v1146 = vunpack.c.l.b16 %v1132
        %v1147 = vpack.c.b16 %v1144, %v1143
        %v1148 = vpack.c.b16 %v1146, %v1145
        %v1152 = vsel %vm440, %v1126, 0
        %1154 = vmatprep.subr.bf16.mxu0 0
        %1155 = vmatpush1.bf16.msra.mxu0 0
        %1156 = vmatprep.subr.bf16.mxu0 0
        %1157 = vmatpush1.bf16.msra.mxu0 0
        %1158 = vmatprep.subr.bf16.mxu0 0
        %1159 = vmatpush1.bf16.msra.mxu0 0
        %1160 = vmatprep.subr.bf16.mxu0 0
        %1161 = vmatpush1.bf16.msra.mxu0 0
        %1162 = vmatprep.subr.bf16.mxu0 0
        %1163 = vmatpush1.bf16.msra.mxu0 0
        %1164 = vmatprep.subr.bf16.mxu0 0
        %1165 = vmatpush1.bf16.msra.mxu0 0
        %1166 = vmatprep.subr.bf16.mxu0 0
        %1167 = vmatpush1.bf16.msra.mxu0 %v1148
        %1168 = vmatprep.subr.bf16.mxu0 0
        %1169 = vmatpush1.bf16.msra.mxu0 %v1147
        %1170 = vmatprep.subr.bf16.mxu0 0
        %1171 = vmatpush2.bf16.msra.mxu0 0
        %1172 = vmatprep.subr.bf16.mxu0 0
        %1173 = vmatpush2.bf16.msra.mxu0 0
        %1174 = vmatprep.subr.bf16.mxu0 0
        %1175 = vmatpush2.bf16.msra.mxu0 0
        %1176 = vmatprep.subr.bf16.mxu0 0
        %1177 = vmatpush2.bf16.msra.mxu0 0
        %1178 = vmatprep.subr.bf16.mxu0 0
        %1179 = vmatpush2.bf16.msra.mxu0 0
        %1180 = vmatprep.subr.bf16.mxu0 0
        %1181 = vmatpush2.bf16.msra.mxu0 0
        %1182 = vmatprep.subr.bf16.mxu0 0
        %1183 = vmatpush2.bf16.msra.mxu0 0
        %1184 = vmatprep.subr.bf16.mxu0 0
        %1185 = vmatpush2.bf16.msra.mxu0 0
        %1186 = vmatprep.mubr.bf16.mxu0 0
        %1187 = vmatmul.mubr.bf16.gmra.mxu0 %v1152
        %v1188 = vpop.f32.mrf.mxu0
        %v1189 = vadd.f32 %v1137, %v1188
        %v1190 = vpop.f32.mrf.mxu0
        %v1191 = vpop.f32.mrf.mxu0
        %v1192 = vpop.f32.mrf.mxu0
        %1193 = vdwg.mxu0
        %v1194 = vmul.f32 %v1189, 1.702
        %v1195 = vxor.u32 %v1194, 2147483648
        %v1196 = vmul.f32 %v1195, 1.442695
        %v1197 = vpow.pop %v1196
        %v1198 = vadd.f32 %v1197, 1.0
        %v1199 = vrcp.pop %v1198
        %v1200 = vmul.f32 1.0, %v1199
        %v1201 = vmul.f32 %v1189, %v1200
        %v1202 = vpack.c.bf16 %v1201, %v1201
        %v1203 = vld [vmem:[%s11] sm:$0xf]
        %v1204 = vld [vmem:[%s11 + $0x4] sm:$0xf]
        %v1205 = vld [vmem:[%s11 + $0x8] sm:$0xf]
        %v1206 = vld [vmem:[%s11 + $0xc] sm:$0xf]
        %v1207 = vld [vmem:[%s11 + $0x10] sm:$0xf]
        %v1208 = vld [vmem:[%s11 + $0x14] sm:$0xf]
        %v1209 = vld [vmem:[%s11 + $0x18] sm:$0xf]
        %v1210 = vld [vmem:[%s11 + $0x1c] sm:$0xf]
        %v1211 = vld [vmem:[%s11 + $0x20] sm:$0xf]
        %v1212 = vld [vmem:[%s11 + $0x24] sm:$0xf]
        %v1213 = vld [vmem:[%s11 + $0x28] sm:$0xf]
        %v1214 = vld [vmem:[%s11 + $0x2c] sm:$0xf]
        %v1215 = vld [vmem:[%s11 + $0x30] sm:$0xf]
        %v1216 = vld [vmem:[%s11 + $0x34] sm:$0xf]
        %v1217 = vld [vmem:[%s11 + $0x38] sm:$0xf]
        %v1218 = vld [vmem:[%s11 + $0x3c] sm:$0xf]
        %v1220 = vlaneseq
        %v1221 = vshrl.u32 %v1220, 7
        %v1222 = vsub.s32 0, %v1221
        %v1223 = vrot.slane %v1128, %v1222
        %v1241 = vunpack.c.l.b16 %v1203
        %v1242 = vunpack.c.l.b16 %v1204
        %v1243 = vunpack.c.l.b16 %v1205
        %v1244 = vunpack.c.l.b16 %v1206
        %v1245 = vunpack.c.l.b16 %v1207
        %v1246 = vunpack.c.l.b16 %v1208
        %v1247 = vunpack.c.l.b16 %v1209
        %v1248 = vunpack.c.l.b16 %v1210
        %v1249 = vunpack.c.l.b16 %v1211
        %v1250 = vunpack.c.l.b16 %v1212
        %v1251 = vunpack.c.l.b16 %v1213
        %v1252 = vunpack.c.l.b16 %v1214
        %v1253 = vunpack.c.l.b16 %v1215
        %v1254 = vunpack.c.l.b16 %v1216
        %v1255 = vunpack.c.l.b16 %v1217
        %v1256 = vunpack.c.l.b16 %v1218
        %v1257 = vpack.c.b16 %v1242, %v1241
        %v1258 = vpack.c.b16 %v1244, %v1243
        %v1259 = vpack.c.b16 %v1246, %v1245
        %v1260 = vpack.c.b16 %v1248, %v1247
        %v1261 = vpack.c.b16 %v1250, %v1249
        %v1262 = vpack.c.b16 %v1252, %v1251
        %v1263 = vpack.c.b16 %v1254, %v1253
        %v1264 = vpack.c.b16 %v1256, %v1255
        %1273 = vmatprep.subr.bf16.mxu0 0
        %1274 = vmatpush1.bf16.msra.mxu0 %v1264
        %1275 = vmatprep.subr.bf16.mxu0 0
        %1276 = vmatpush1.bf16.msra.mxu0 %v1263
        %1277 = vmatprep.subr.bf16.mxu0 0
        %1278 = vmatpush1.bf16.msra.mxu0 %v1262
        %1279 = vmatprep.subr.bf16.mxu0 0
        %1280 = vmatpush1.bf16.msra.mxu0 %v1261
        %1281 = vmatprep.subr.bf16.mxu0 0
        %1282 = vmatpush1.bf16.msra.mxu0 %v1260
        %1283 = vmatprep.subr.bf16.mxu0 0
        %1284 = vmatpush1.bf16.msra.mxu0 %v1259
        %1285 = vmatprep.subr.bf16.mxu0 0
        %1286 = vmatpush1.bf16.msra.mxu0 %v1258
        %1287 = vmatprep.subr.bf16.mxu0 0
        %1288 = vmatpush1.bf16.msra.mxu0 %v1257
        %1289 = vmatprep.subr.bf16.mxu0 0
        %1290 = vmatpush2.bf16.msra.mxu0 0
        %1291 = vmatprep.subr.bf16.mxu0 0
        %1292 = vmatpush2.bf16.msra.mxu0 0
        %1293 = vmatprep.subr.bf16.mxu0 0
        %1294 = vmatpush2.bf16.msra.mxu0 0
        %1295 = vmatprep.subr.bf16.mxu0 0
        %1296 = vmatpush2.bf16.msra.mxu0 0
        %1297 = vmatprep.subr.bf16.mxu0 0
        %1298 = vmatpush2.bf16.msra.mxu0 0
        %1299 = vmatprep.subr.bf16.mxu0 0
        %1300 = vmatpush2.bf16.msra.mxu0 0
        %1301 = vmatprep.subr.bf16.mxu0 0
        %1302 = vmatpush2.bf16.msra.mxu0 0
        %1303 = vmatprep.subr.bf16.mxu0 0
        %1304 = vmatpush2.bf16.msra.mxu0 0
        %1305 = vmatprep.mubr.bf16.mxu0 0
        %1306 = vmatmul.mubr.bf16.gmra.mxu0 %v1202
        %v1307 = vpop.f32.mrf.mxu0
        %v1308 = vadd.f32 %v1223, %v1307
        %v1309 = vpop.f32.mrf.mxu0
        %v1310 = vpop.f32.mrf.mxu0
        %v1311 = vpop.f32.mrf.mxu0
        %1312 = vdwg.mxu0
        %v1313 = vadd.f32 %v1096, %v1308
        %1314 = vst.msk [vmem:[%s431] sm:$0xff] %vm440, %v1313
        %s1315 = sand.u32 %s313, 1
        %s1316 = scalar_lea.sflag [#allocation5], %s1315
        %s1317 = sand.u32 %s313, 1
        %s1318 = smul.addr %s1317, 8
        %s1319 = scalar_lea.vmem [#allocation4], %s1318
        // Predicated region
        $region73: #{tpu_custom_call.1} parent=71 // pred_check
          %p1320 = pneg %p323
        $region74: #{tpu_custom_call.1} parent=71 // pred_check_branch
          %1322 = sbr.rel (%p1320) target = $region76
        $region75: #{tpu_custom_call.1} parent=71 // pred_region
          %s1324 = ssub.s32 128, 128
          %1325 = vsyncadd %s1316, %s1324
          %s1326 = smul.addr %s27, 128
          %s1327 = scalar_lea.hbm %s13, %s1326
          %s1329 = sshll.u32 %s1319, 4
          %s1330 = int_to_ptr.vmem [resolvable:$true] %s1329
          %1332 = dma.vmem_to_hbm [thread:$0]  %s1330, 128, %s1327, %s1316
        $region76: #{tpu_custom_call.1} parent=71 // pred_fallthru
          _
      $region72: #{tpu_custom_call.1} parent=5 // pred_fallthru
        _
      %p1333 = scmp.le.s32.totalorder 2, %s22
      // Predicated region
      $region77: #{tpu_custom_call.1} parent=5 // pred_check
        %p1334 = pneg %p1333
      $region78: #{tpu_custom_call.1} parent=5 // pred_check_branch
        %1336 = sbr.rel (%p1334) target = $region80
      $region79: #{tpu_custom_call.1} parent=5 // pred_region
        %s1337 = ssub.s32 %s22, 2
        // Predicated region
        $region81: #{tpu_custom_call.1} parent=79 // pred_check
          %p1338 = pneg %p329
        $region82: #{tpu_custom_call.1} parent=79 // pred_check_branch
          %1340 = sbr.rel (%p1338) target = $region84
        $region83: #{tpu_custom_call.1} parent=79 // pred_region
          %s1341 = sand.u32 %s314, 1
          %s1342 = scalar_lea.sflag [#allocation5], %s1341
          %s1343 = sand.u32 %s314, 1
          %s1344 = smul.addr %s1343, 8
          %s1345 = scalar_lea.vmem [#allocation4], %s1344
          %1346 = dma.done %s1342, 128
        $region84: #{tpu_custom_call.1} parent=79 // pred_fallthru
          _
      $region80: #{tpu_custom_call.1} parent=5 // pred_fallthru
        _
    $region6: #{tpu_custom_call.1} parent=1 // loop_footer
      %s26 = sadd.s32 1, %s22
    $region7: #{tpu_custom_call.1} parent=1 // loop_footer_branch
      %21 = sbr.rel target = $region3
    $region8: #{tpu_custom_call.1} parent=1 // loop_exit
      _
    %1347 = vsyncpa [#allocation5], 1
    %s1348 = scalar_lea.sflag [#allocation5], 1
    %1349 = vsyncpa %s1348, 1

</llo_original>
